<compile_context>
chip_gen: v6e
topology: v6e:2x2x1
jax: 0.10.0
libtpu: 0.0.40
codegen_flags: <defaults>
</compile_context>

<pallas_src>
import numpy as np
import jax
import jax.numpy as jnp
from jax.experimental import pallas as pl
from jax.experimental.pallas import tpu as pltpu

TWO_PI = 2.0 * np.pi
EPS = 1e-5


def _gauss_filter_kernel(feat_ref, rho_ref, th_ref, par_ref, wt_ref, out_ref):
    """One grid step = one feature x one tile of B points (points on lanes).

    feat_ref : [1, V, Bt]   this feature's values
    rho_ref  : [V, Bt]
    th_ref   : [R, V, Bt]   pre-rotated & wrapped thetas (feature independent)
    par_ref  : [1, 5, G]    packed (mu_rho, mu_theta, inv_var_rho, inv_var_theta, b)
    wt_ref   : [1, G, G]    W_conv transposed: wt[h, g] = W[g, h]
    out_ref  : [1, G, Bt]   lane-dense output tile
    """
    n_rot = th_ref.shape[0]

    feat = feat_ref[0]                       # [V, B]
    rho = rho_ref[...]                       # [V, B]
    th = th_ref[...]                         # [R, V, B]
    p = par_ref[0]                           # [5, G]
    wt = wt_ref[0]                           # [G, G]

    mu_r = p[0][:, None, None]               # [G, 1, 1]
    mu_t = p[1][:, None, None]               # [G, 1, 1]
    inv_vr = p[2][:, None, None]             # [G, 1, 1]
    inv_vt = p[3][:, None, None]             # [G, 1, 1]
    bias = p[4][:, None]                     # [G, 1]

    # rho part of the exponent is rotation independent: compute it once.
    d_r = rho[None] - mu_r                   # [G, V, B]
    quad_r = (d_r * d_r) * inv_vr            # [G, V, B]

    # All rotations at once, one fused exp per element (EUP is the binding unit).
    d_t = th[:, None] - mu_t[None]                                  # [R, G, V, B]
    g_act = jnp.exp(-(quad_r[None] + (d_t * d_t) * inv_vt[None]))   # [R, G, V, B]

    # Vertex reduction over the sublane axis V; mean_gauss_activation folded in:
    #   sum_v (g / (sum_v g + eps)) * f == (sum_v g*f) / (sum_v g + eps)
    den = jnp.sum(g_act, axis=2)                          # [R, G, B]
    num = jnp.sum(g_act * feat[None, None], axis=2)       # [R, G, B]
    desc = num / (den + EPS)                              # [R, G, B]

    best = None
    for r in range(n_rot):                                # R is tiny and static
        conv = jnp.dot(wt, desc[r],
                       preferred_element_type=jnp.float32) + bias   # [G, B]
        best = conv if best is None else jnp.maximum(best, conv)

    out_ref[0] = jnp.maximum(best, 0.0)                   # relu, lane-dense store


def _round_up(x, m):
    return (x + m - 1) // m * m


def _vmem_limit_bytes():
    """Generation-aware scoped-VMEM target (~57 MiB v5e/v6e, ~28 MiB/core v7x)."""
    cap = 128 << 20
    try:
        info = pltpu.get_tpu_info()
        cap = int(getattr(info, "vmem_capacity_bytes", cap))
    except Exception:
        pass
    return max(16 << 20, min(64 << 20, int(cap * 0.45)))


def _pick_b_tile(B, V, G, R, F, vmem_limit_bytes):
    """Pick the lane (points) tile Bt so temporaries + pipelined tiles fit VMEM."""
    if B <= 256:
        return B                      # single full-extent tile (no 128 constraint)
    budget = int(vmem_limit_bytes * 0.7)

    def step_bytes(bt):
        f32 = 4
        temps = (3 * R * G * V + G * V) * bt * f32        # [R,G,V,Bt] temps + quad_r
        pipelined = 2 * ((2 + R) * V * bt + G * bt + 5 * G + G * G) * f32
        small = 6 * R * G * bt * f32                      # den/num/desc/conv/best
        return temps + pipelined + small

    bt = min(1024, _round_up(B, 128))
    while bt > 128 and step_bytes(bt) > budget:
        bt -= 128
    # Keep >= 2 grid steps when possible (megacore; v7x has 2 TensorCores).
    while bt > 128 and F * ((B + bt - 1) // bt) < 2:
        bt = max(128, _round_up(bt // 2, 128))
    return bt


def gaussian_filter_forward(feature, rhos, thetas, params, *,
                            n_thetas, n_rhos, n_rotations, b_tile=None):
    B, V, F = feature.shape
    G = n_thetas * n_rhos
    R = n_rotations

    vmem_limit = _vmem_limit_bytes()
    Bt = b_tile or _pick_b_tile(B, V, G, R, F, vmem_limit)
    NB = pl.cdiv(B, Bt)
    Bp = NB * Bt

    # Points (B) on lanes, vertices (V) on sublanes.
    feat_t = jnp.transpose(feature, (2, 1, 0)).astype(jnp.float32)     # [F, V, B]
    rho = jnp.transpose(rhos[..., 0], (1, 0)).astype(jnp.float32)      # [V, B]
    theta = jnp.transpose(thetas[..., 0], (1, 0)).astype(jnp.float32)  # [V, B]

    # TODO(synk): the original PyTorch code mutates `thetas` in place across
    # rotations/features through a reshape-view `+=`; we implement the intended
    # per-rotation offset k*2*pi/n_rotations without that aliasing side effect.
    offs = jnp.asarray([k * TWO_PI / R for k in range(R)], jnp.float32)
    theta_rot = jnp.mod(theta[None] + offs[:, None, None], TWO_PI)     # [R, V, B]

    # Pack the five per-feature parameter rows (inverse variances pre-computed).
    inv_vr = 1.0 / (params["sigma_rho"].astype(jnp.float32) ** 2 + EPS)
    inv_vt = 1.0 / (params["sigma_theta"].astype(jnp.float32) ** 2 + EPS)
    packed = jnp.concatenate(
        [params["mu_rho"].astype(jnp.float32),
         params["mu_theta"].astype(jnp.float32),
         inv_vr, inv_vt,
         params["b_conv"].astype(jnp.float32)], axis=1)                # [F, 5, G]
    w_t = jnp.transpose(params["W_conv"].astype(jnp.float32), (0, 2, 1))  # [F, G, G]

    if Bp != B:
        pad = Bp - B
        feat_t = jnp.pad(feat_t, ((0, 0), (0, 0), (0, pad)))
        rho = jnp.pad(rho, ((0, 0), (0, pad)))
        theta_rot = jnp.pad(theta_rot, ((0, 0), (0, 0), (0, pad)))

    cost = pl.CostEstimate(
        flops=int(F * R * (8 * G * V * Bp + 2 * G * G * Bp)),
        transcendentals=int(F * R * G * V * Bp),
        bytes_accessed=int(4 * (F * V * Bp + (1 + R) * V * Bp
                                + NB * F * (5 * G + G * G) + F * G * Bp)))

    out = pl.pallas_call(
        _gauss_filter_kernel,
        out_shape=jax.ShapeDtypeStruct((F, G, Bp), jnp.float32),
        grid_spec=pltpu.PrefetchScalarGridSpec(
            num_scalar_prefetch=0,
            grid=(NB, F),  # feature axis fastest: rho/theta tiles reused across it
            in_specs=[
                pl.BlockSpec((1, V, Bt), lambda b, f: (f, 0, b)),   # feature slab
                pl.BlockSpec((V, Bt), lambda b, f: (0, b)),         # rho
                pl.BlockSpec((R, V, Bt), lambda b, f: (0, 0, b)),   # rotated thetas
                pl.BlockSpec((1, 5, G), lambda b, f: (f, 0, 0)),    # packed params
                pl.BlockSpec((1, G, G), lambda b, f: (f, 0, 0)),    # W_conv^T
            ],
            out_specs=pl.BlockSpec((1, G, Bt), lambda b, f: (f, 0, b)),
        ),
        compiler_params=pltpu.CompilerParams(
            dimension_semantics=("parallel", "parallel"),
            vmem_limit_bytes=int(vmem_limit)),
        cost_estimate=cost,
    )(feat_t, rho, theta_rot, packed, w_t)

    # torch stacks per-feature descriptors along dim=1: [B, F, G] -> [B, F*G].
    out = jnp.transpose(out[:, :, :B], (2, 0, 1)).reshape(B, F * G)
    return out


def init_params(key, *, max_rho, n_thetas, n_rhos, n_features):
    """Deterministic re-implementation of GaussianFiler.__init__ parameters."""
    G = n_thetas * n_rhos
    range_rho = np.linspace(0.0, max_rho, n_rhos + 1, dtype=np.float32)[1:]
    range_theta = np.linspace(0.0, 2.0 * np.pi, n_thetas + 1,
                              dtype=np.float32)[:-1]
    grid_rho, grid_theta = np.meshgrid(range_rho, range_theta, indexing="ij")
    mu_rho0 = grid_rho.reshape(1, G).astype(np.float32)
    mu_theta0 = grid_theta.reshape(1, G).astype(np.float32)
    sigma_rho0 = np.full((1, G), max_rho / 8.0, np.float32)
    sigma_theta0 = np.ones((1, G), np.float32)

    kw, kb = jax.random.split(key)
    # xavier_normal_: std = sqrt(2 / (fan_in + fan_out)) = sqrt(1 / G)
    W = jax.random.normal(kw, (n_features, G, G), jnp.float32) * np.sqrt(1.0 / G)
    # TODO(synk): PyTorch's b_conv is an *uninitialized* torch.Tensor(G); we use
    # a deterministic small normal init instead.
    b = 0.1 * jax.random.normal(kb, (n_features, 1, G), jnp.float32)

    def rep(x):
        return jnp.asarray(np.broadcast_to(x[None], (n_features, 1, G)).copy())

    return dict(
        mu_rho=rep(mu_rho0), mu_theta=rep(mu_theta0),
        sigma_rho=rep(sigma_rho0), sigma_theta=rep(sigma_theta0),
        W_conv=W, b_conv=b)


def reference_forward(feature, rhos, thetas, params, *,
                      n_thetas, n_rhos, n_rotations):
    """Pure-JAX reference matching the module semantics (per-feature loops)."""
    B, V, F = feature.shape
    rho = rhos[..., 0]
    theta = thetas[..., 0]
    all_desc = []
    for i in range(F):
        feat = feature[:, :, i]
        mu_r = params["mu_rho"][i, 0]
        mu_t = params["mu_theta"][i, 0]
        sr = params["sigma_rho"][i, 0]
        st = params["sigma_theta"][i, 0]
        W = params["W_conv"][i]
        b = params["b_conv"][i, 0]
        rho_act = jnp.exp(-(rho[:, :, None] - mu_r) ** 2 / (sr ** 2 + EPS))
        convs = []
        for k in range(n_rotations):
            th = jnp.mod(theta + k * TWO_PI / n_rotations, TWO_PI)
            th_act = jnp.exp(-(th[:, :, None] - mu_t) ** 2 / (st ** 2 + EPS))
            g = rho_act * th_act
            g = g / (jnp.sum(g, axis=1, keepdims=True) + EPS)
            desc = jnp.sum(g * feat[:, :, None], axis=1)
            convs.append(desc @ W + b)
        all_desc.append(jax.nn.relu(jnp.max(jnp.stack(convs), axis=0)))
    return jnp.stack(all_desc, axis=1).reshape(B, F * (n_thetas * n_rhos))


if __name__ == "__main__":
    # Small, module-consistent shapes.
    n_thetas, n_rhos, n_rotations, n_features = 4, 3, 4, 4
    max_rho = 2.0
    B, V = 2, 8
    G = n_thetas * n_rhos

    key = jax.random.PRNGKey(0)
    k_feat, k_rho, k_theta, k_param = jax.random.split(key, 4)
    feature = jax.random.normal(k_feat, (B, V, n_features), jnp.float32)
    rhos = jax.random.uniform(k_rho, (B, V, 1), jnp.float32, 0.0, max_rho)
    thetas = jax.random.uniform(k_theta, (B, V, 1), jnp.float32, 0.0, TWO_PI)

    params = init_params(k_param, max_rho=max_rho, n_thetas=n_thetas,
                         n_rhos=n_rhos, n_features=n_features)

    out = gaussian_filter_forward(feature, rhos, thetas, params,
                                  n_thetas=n_thetas, n_rhos=n_rhos,
                                  n_rotations=n_rotations)
    out = jax.block_until_ready(out)
    assert out.shape == (B, n_features * n_rhos * n_thetas)

    ref = reference_forward(feature, rhos, thetas, params,
                            n_thetas=n_thetas, n_rhos=n_rhos,
                            n_rotations=n_rotations)
    np.testing.assert_allclose(np.asarray(out), np.asarray(ref),
                               rtol=1e-4, atol=1e-4)
    print("KERNEL_OK")
</pallas_src>

<mosaic_0001>
module attributes {stable_mosaic.version = 11 : i64} {
  func.func @_gauss_filter_kernel(%arg0: i32, %arg1: i32, %arg2: memref<1x8x2xf32, #tpu.memory_space<vmem>>, %arg3: memref<8x2xf32, #tpu.memory_space<vmem>>, %arg4: memref<4x8x2xf32, #tpu.memory_space<vmem>>, %arg5: memref<1x5x12xf32, #tpu.memory_space<vmem>>, %arg6: memref<1x12x12xf32, #tpu.memory_space<vmem>>, %arg7: memref<1x12x2xf32, #tpu.memory_space<vmem>>) attributes {dimension_semantics = [#tpu.dimension_semantics<parallel>, #tpu.dimension_semantics<parallel>], iteration_bounds = array<i64: 1, 4>, scalar_prefetch = 0 : i64, scratch_operands = 0 : i64, tpu.core_type = #tpu.core_type<tc>, window_params = [{transform_indices = @transform_0, window_bounds = array<i64: 1, 8, 2>}, {transform_indices = @transform_1, window_bounds = array<i64: 8, 2>}, {transform_indices = @transform_2, window_bounds = array<i64: 4, 8, 2>}, {transform_indices = @transform_3, window_bounds = array<i64: 1, 5, 12>}, {transform_indices = @transform_4, window_bounds = array<i64: 1, 12, 12>}, {transform_indices = @transform_5, window_bounds = array<i64: 1, 12, 2>}]} {
    %c0 = arith.constant 0 : index
    %c0_0 = arith.constant 0 : index
    %c0_1 = arith.constant 0 : index
    %0 = vector.load %arg2[%c0, %c0_0, %c0_1] : memref<1x8x2xf32, #tpu.memory_space<vmem>>, vector<1x8x2xf32>
    %1 = vector.shape_cast %0 : vector<1x8x2xf32> to vector<8x2xf32>
    %c0_2 = arith.constant 0 : index
    %c0_3 = arith.constant 0 : index
    %2 = vector.load %arg3[%c0_2, %c0_3] : memref<8x2xf32, #tpu.memory_space<vmem>>, vector<8x2xf32>
    %c0_4 = arith.constant 0 : index
    %c0_5 = arith.constant 0 : index
    %c0_6 = arith.constant 0 : index
    %3 = vector.load %arg4[%c0_4, %c0_5, %c0_6] : memref<4x8x2xf32, #tpu.memory_space<vmem>>, vector<4x8x2xf32>
    %c0_7 = arith.constant 0 : index
    %c0_8 = arith.constant 0 : index
    %c0_9 = arith.constant 0 : index
    %4 = vector.load %arg5[%c0_7, %c0_8, %c0_9] : memref<1x5x12xf32, #tpu.memory_space<vmem>>, vector<1x5x12xf32>
    %5 = vector.shape_cast %4 : vector<1x5x12xf32> to vector<5x12xf32>
    %c0_10 = arith.constant 0 : index
    %c0_11 = arith.constant 0 : index
    %c0_12 = arith.constant 0 : index
    %6 = vector.load %arg6[%c0_10, %c0_11, %c0_12] : memref<1x12x12xf32, #tpu.memory_space<vmem>>, vector<1x12x12xf32>
    %7 = vector.shape_cast %6 : vector<1x12x12xf32> to vector<12x12xf32>
    %8 = vector.extract_strided_slice %5 {offsets = [0, 0], sizes = [1, 12], strides = [1, 1]} : vector<5x12xf32> to vector<1x12xf32>
    %9 = vector.shape_cast %8 : vector<1x12xf32> to vector<12xf32>
    %10 = vector.shape_cast %9 : vector<12xf32> to vector<12x1x1xf32>
    %11 = vector.extract_strided_slice %5 {offsets = [1, 0], sizes = [1, 12], strides = [1, 1]} : vector<5x12xf32> to vector<1x12xf32>
    %12 = vector.shape_cast %11 : vector<1x12xf32> to vector<12xf32>
    %13 = vector.shape_cast %12 : vector<12xf32> to vector<12x1x1xf32>
    %14 = vector.extract_strided_slice %5 {offsets = [2, 0], sizes = [1, 12], strides = [1, 1]} : vector<5x12xf32> to vector<1x12xf32>
    %15 = vector.shape_cast %14 : vector<1x12xf32> to vector<12xf32>
    %16 = vector.shape_cast %15 : vector<12xf32> to vector<12x1x1xf32>
    %17 = vector.extract_strided_slice %5 {offsets = [3, 0], sizes = [1, 12], strides = [1, 1]} : vector<5x12xf32> to vector<1x12xf32>
    %18 = vector.shape_cast %17 : vector<1x12xf32> to vector<12xf32>
    %19 = vector.shape_cast %18 : vector<12xf32> to vector<12x1x1xf32>
    %20 = vector.extract_strided_slice %5 {offsets = [4, 0], sizes = [1, 12], strides = [1, 1]} : vector<5x12xf32> to vector<1x12xf32>
    %21 = vector.shape_cast %20 : vector<1x12xf32> to vector<12xf32>
    %22 = vector.shape_cast %21 : vector<12xf32> to vector<12x1xf32>
    %23 = vector.shape_cast %2 : vector<8x2xf32> to vector<1x8x2xf32>
    %24 = vector.broadcast %23 : vector<1x8x2xf32> to vector<12x8x2xf32>
    %25 = vector.broadcast %10 : vector<12x1x1xf32> to vector<12x8x2xf32>
    %26 = arith.subf %24, %25 : vector<12x8x2xf32>
    %27 = arith.mulf %26, %26 : vector<12x8x2xf32>
    %28 = vector.broadcast %16 : vector<12x1x1xf32> to vector<12x8x2xf32>
    %29 = arith.mulf %27, %28 : vector<12x8x2xf32>
    %30 = vector.shape_cast %3 : vector<4x8x2xf32> to vector<4x1x8x2xf32>
    %31 = vector.shape_cast %13 : vector<12x1x1xf32> to vector<1x12x1x1xf32>
    %32 = vector.broadcast %30 : vector<4x1x8x2xf32> to vector<4x12x8x2xf32>
    %33 = vector.broadcast %31 : vector<1x12x1x1xf32> to vector<4x12x8x2xf32>
    %34 = arith.subf %32, %33 : vector<4x12x8x2xf32>
    %35 = vector.shape_cast %29 : vector<12x8x2xf32> to vector<1x12x8x2xf32>
    %36 = arith.mulf %34, %34 : vector<4x12x8x2xf32>
    %37 = vector.shape_cast %19 : vector<12x1x1xf32> to vector<1x12x1x1xf32>
    %38 = vector.broadcast %37 : vector<1x12x1x1xf32> to vector<4x12x8x2xf32>
    %39 = arith.mulf %36, %38 : vector<4x12x8x2xf32>
    %40 = vector.broadcast %35 : vector<1x12x8x2xf32> to vector<4x12x8x2xf32>
    %41 = arith.addf %40, %39 : vector<4x12x8x2xf32>
    %cst = arith.constant 0.000000e+00 : f32
    %42 = vector.broadcast %cst : f32 to vector<4x12x8x2xf32>
    %43 = arith.subf %42, %41 : vector<4x12x8x2xf32>
    %44 = math.exp %43 : vector<4x12x8x2xf32>
    %cst_13 = arith.constant dense<0.000000e+00> : vector<4x12x2xf32>
    %45 = vector.multi_reduction <add>, %44, %cst_13 [2] : vector<4x12x8x2xf32> to vector<4x12x2xf32>
    %46 = vector.shape_cast %1 : vector<8x2xf32> to vector<1x1x8x2xf32>
    %47 = vector.broadcast %46 : vector<1x1x8x2xf32> to vector<4x12x8x2xf32>
    %48 = arith.mulf %44, %47 : vector<4x12x8x2xf32>
    %cst_14 = arith.constant dense<0.000000e+00> : vector<4x12x2xf32>
    %49 = vector.multi_reduction <add>, %48, %cst_14 [2] : vector<4x12x8x2xf32> to vector<4x12x2xf32>
    %cst_15 = arith.constant 9.99999974E-6 : f32
    %50 = vector.broadcast %cst_15 : f32 to vector<4x12x2xf32>
    %51 = arith.addf %45, %50 : vector<4x12x2xf32>
    %52 = arith.divf %49, %51 : vector<4x12x2xf32>
    %53 = vector.extract_strided_slice %52 {offsets = [0, 0, 0], sizes = [1, 12, 2], strides = [1, 1, 1]} : vector<4x12x2xf32> to vector<1x12x2xf32>
    %54 = vector.shape_cast %53 : vector<1x12x2xf32> to vector<12x2xf32>
    %cst_16 = arith.constant dense<0.000000e+00> : vector<12x2xf32>
    %55 = tpu.matmul %7, %54, %cst_16 {dimension_numbers = #tpu.dot_dimension_numbers<[1], [0], [0], [1], [0, 0, 1, 1], [], []>} : vector<12x12xf32>, vector<12x2xf32>, vector<12x2xf32> -> vector<12x2xf32>
    %56 = vector.broadcast %22 : vector<12x1xf32> to vector<12x2xf32>
    %57 = arith.addf %55, %56 : vector<12x2xf32>
    %58 = vector.extract_strided_slice %52 {offsets = [1, 0, 0], sizes = [1, 12, 2], strides = [1, 1, 1]} : vector<4x12x2xf32> to vector<1x12x2xf32>
    %59 = vector.shape_cast %58 : vector<1x12x2xf32> to vector<12x2xf32>
    %cst_17 = arith.constant dense<0.000000e+00> : vector<12x2xf32>
    %60 = tpu.matmul %7, %59, %cst_17 {dimension_numbers = #tpu.dot_dimension_numbers<[1], [0], [0], [1], [0, 0, 1, 1], [], []>} : vector<12x12xf32>, vector<12x2xf32>, vector<12x2xf32> -> vector<12x2xf32>
    %61 = vector.broadcast %22 : vector<12x1xf32> to vector<12x2xf32>
    %62 = arith.addf %60, %61 : vector<12x2xf32>
    %63 = arith.maximumf %57, %62 : vector<12x2xf32>
    %64 = vector.extract_strided_slice %52 {offsets = [2, 0, 0], sizes = [1, 12, 2], strides = [1, 1, 1]} : vector<4x12x2xf32> to vector<1x12x2xf32>
    %65 = vector.shape_cast %64 : vector<1x12x2xf32> to vector<12x2xf32>
    %cst_18 = arith.constant dense<0.000000e+00> : vector<12x2xf32>
    %66 = tpu.matmul %7, %65, %cst_18 {dimension_numbers = #tpu.dot_dimension_numbers<[1], [0], [0], [1], [0, 0, 1, 1], [], []>} : vector<12x12xf32>, vector<12x2xf32>, vector<12x2xf32> -> vector<12x2xf32>
    %67 = vector.broadcast %22 : vector<12x1xf32> to vector<12x2xf32>
    %68 = arith.addf %66, %67 : vector<12x2xf32>
    %69 = arith.maximumf %63, %68 : vector<12x2xf32>
    %70 = vector.extract_strided_slice %52 {offsets = [3, 0, 0], sizes = [1, 12, 2], strides = [1, 1, 1]} : vector<4x12x2xf32> to vector<1x12x2xf32>
    %71 = vector.shape_cast %70 : vector<1x12x2xf32> to vector<12x2xf32>
    %cst_19 = arith.constant dense<0.000000e+00> : vector<12x2xf32>
    %72 = tpu.matmul %7, %71, %cst_19 {dimension_numbers = #tpu.dot_dimension_numbers<[1], [0], [0], [1], [0, 0, 1, 1], [], []>} : vector<12x12xf32>, vector<12x2xf32>, vector<12x2xf32> -> vector<12x2xf32>
    %73 = vector.broadcast %22 : vector<12x1xf32> to vector<12x2xf32>
    %74 = arith.addf %72, %73 : vector<12x2xf32>
    %75 = arith.maximumf %69, %74 : vector<12x2xf32>
    %cst_20 = arith.constant 0.000000e+00 : f32
    %76 = vector.broadcast %cst_20 : f32 to vector<12x2xf32>
    %77 = arith.maximumf %75, %76 : vector<12x2xf32>
    %c0_21 = arith.constant 0 : index
    %c0_22 = arith.constant 0 : index
    %c0_23 = arith.constant 0 : index
    %78 = vector.load %arg7[%c0_21, %c0_22, %c0_23] : memref<1x12x2xf32, #tpu.memory_space<vmem>>, vector<1x12x2xf32>
    %79 = vector.shape_cast %78 : vector<1x12x2xf32> to vector<12x2xf32>
    %80 = vector.shape_cast %77 : vector<12x2xf32> to vector<1x12x2xf32>
    tpu.vector_store %arg7[%c0_21, %c0_22, %c0_23], %80 {strides = array<i32>} : memref<1x12x2xf32, #tpu.memory_space<vmem>>, vector<1x12x2xf32>,
    return
  }
  func.func @transform_0(%arg0: i32, %arg1: i32) -> (i32, i32, i32) {
    %c0_i32 = arith.constant 0 : i32
    %c0_i32_0 = arith.constant 0 : i32
    return %arg1, %c0_i32, %arg0 : i32, i32, i32
  }
  func.func @transform_1(%arg0: i32, %arg1: i32) -> (i32, i32) {
    %c0_i32 = arith.constant 0 : i32
    %c0_i32_0 = arith.constant 0 : i32
    return %c0_i32, %arg0 : i32, i32
  }
  func.func @transform_2(%arg0: i32, %arg1: i32) -> (i32, i32, i32) {
    %c0_i32 = arith.constant 0 : i32
    %c0_i32_0 = arith.constant 0 : i32
    %c0_i32_1 = arith.constant 0 : i32
    return %c0_i32, %c0_i32_0, %arg0 : i32, i32, i32
  }
  func.func @transform_3(%arg0: i32, %arg1: i32) -> (i32, i32, i32) {
    %c0_i32 = arith.constant 0 : i32
    %c0_i32_0 = arith.constant 0 : i32
    %c0_i32_1 = arith.constant 0 : i32
    return %arg1, %c0_i32, %c0_i32_0 : i32, i32, i32
  }
  func.func @transform_4(%arg0: i32, %arg1: i32) -> (i32, i32, i32) {
    %c0_i32 = arith.constant 0 : i32
    %c0_i32_0 = arith.constant 0 : i32
    %c0_i32_1 = arith.constant 0 : i32
    return %arg1, %c0_i32, %c0_i32_0 : i32, i32, i32
  }
  func.func @transform_5(%arg0: i32, %arg1: i32) -> (i32, i32, i32) {
    %c0_i32 = arith.constant 0 : i32
    %c0_i32_0 = arith.constant 0 : i32
    return %arg1, %c0_i32, %arg0 : i32, i32, i32
  }
}

</mosaic_0001>

<llo_original>
// kernel: tpu_custom_call.1
$region0: #{tpu_custom_call.1}
  #allocation0 [shape = 'u32[]', space=smem, size = 0x4, offset = 0x4, fixed_abs, tag = 'smem constant byte address 0x4 - core index']
  #allocation1 [shape = 'u32[144,128]{1,0:T(1,128)}', space=vmem, size = 0x12000, scoped, tag = 'internal scratch']
  %s0 = inlined_call_operand.vmem [shape: f32[4,8,2], index: 0, kind: input, shape index: {}]
  %s1 = inlined_call_operand.vmem [shape: f32[8,2], index: 1, kind: input, shape index: {}]
  %s2 = inlined_call_operand.vmem [shape: f32[4,8,2], index: 2, kind: input, shape index: {}]
  %s3 = inlined_call_operand.vmem [shape: f32[4,5,12], index: 3, kind: input, shape index: {}]
  %s4 = inlined_call_operand.vmem [shape: f32[4,12,12], index: 4, kind: input, shape index: {}]
  %s5 = inlined_call_operand.vmem [shape: f32[4,12,2], index: 5, kind: output, shape index: {}]
  %s6 = sld [smem:[#allocation0]]
  $region53: #{tpu_custom_call.1} parent=0
    _
  %s8 = ssub.s32 1, %s6
  %s9 = scalar_select 0, %s8, %s6
  loop: start=0, step=1, limit=6
  $region2: #{tpu_custom_call.1} parent=0 // loop_pre_header
    _
  $region3: #{tpu_custom_call.1} parent=0 // loop_header
    %s11 = sphi 0, %s15
    %p12 = scmp.ge.s32.totalorder %s11, 6
    %s18 = sphi 0, %s30
    %s19 = sphi 0, %s26
    %s20 = sphi 0, %s18
    %s21 = sphi 0, %s19
    %s22 = sphi 0, %s20
    %s23 = sphi 0, %s21
    %s35 = sphi 0, %s37
    %s38 = sphi 0, %s35
    %s39 = sphi 0, %s38
    %s55 = sphi 0, %s39
    %s61 = sphi 0, %s63
    %s64 = sphi 0, %s61
    %s65 = sphi 0, %s64
    %s81 = sphi 0, %s65
    %s87 = sphi 0, %s89
    %s90 = sphi 0, %s87
    %s91 = sphi 0, %s90
    %s107 = sphi 0, %s91
    %s113 = sphi 0, %s115
    %s116 = sphi 0, %s113
    %s117 = sphi 0, %s116
    %s133 = sphi 0, %s117
    %s139 = sphi 0, %s141
    %s142 = sphi 0, %s139
    %s143 = sphi 0, %s142
    %s159 = sphi 0, %s143
    %s167 = sphi 0, %s169
    %s170 = sphi 0, %s167
    %s171 = sphi 0, %s170
    %s187 = sphi 0, %s171
  $region4: #{tpu_custom_call.1} parent=0 // loop_header_branch
    %14 = sbr.rel (%p12) target = $region8
  $region5: #{tpu_custom_call.1} parent=0 // loop_body
    %s16 = ssub.s32 %s11, 1
    %s17 = ssub.s32 %s11, 2
    %s24 = sadd.s32 1, %s19
    %p25 = scmp.ge.s32.totalorder %s24, 4
    %s26 = scalar_select %p25, 0, %s24
    %s27 = sadd.s32 1, %s18
    %s28 = scalar_select %p25, %s27, %s18
    %p29 = scmp.ge.s32.totalorder %s28, 1
    %s30 = scalar_select %p29, 0, %s28
    %s31 = ssub.s32 %s19, %s26
    %s32 = ssub.s32 %s18, %s30
    %s33 = sor.u32 %s31, %s32
    %p34 = scmp.eq.s32.totalorder %s33, 0
    %s36 = sadd.s32 %s35, 1
    %s37 = scalar_select %p34, %s35, %s36
    %p40 = pneg %p34
    %p41 = scmp.eq.s32.totalorder %s11, 3
    %p42 = por %p40, %p41
    %p43 = scmp.ne.s32.totalorder %s35, %s38
    %p44 = scmp.eq.s32.totalorder %s11, 0
    %p45 = por %p43, %p44
    %p46 = scmp.ne.s32.totalorder %s35, %s38
    %p47 = scmp.eq.s32.totalorder %s16, 3
    %p48 = por %p46, %p47
    %p49 = scmp.ne.s32.totalorder %s38, %s39
    %p50 = scmp.eq.s32.totalorder %s16, 0
    %p51 = por %p49, %p50
    %p52 = scmp.ne.s32.totalorder %s38, %s39
    %p53 = scmp.eq.s32.totalorder %s17, 3
    %p54 = por %p52, %p53
    %p56 = scmp.ne.s32.totalorder %s39, %s55
    %p57 = scmp.eq.s32.totalorder %s17, 0
    %p58 = por %p56, %p57
    %s59 = ssub.s32 %s18, %s30
    %p60 = scmp.eq.s32.totalorder %s59, 0
    %s62 = sadd.s32 %s61, 1
    %s63 = scalar_select %p60, %s61, %s62
    %p66 = pneg %p60
    %p67 = scmp.eq.s32.totalorder %s11, 3
    %p68 = por %p66, %p67
    %p69 = scmp.ne.s32.totalorder %s61, %s64
    %p70 = scmp.eq.s32.totalorder %s11, 0
    %p71 = por %p69, %p70
    %p72 = scmp.ne.s32.totalorder %s61, %s64
    %p73 = scmp.eq.s32.totalorder %s16, 3
    %p74 = por %p72, %p73
    %p75 = scmp.ne.s32.totalorder %s64, %s65
    %p76 = scmp.eq.s32.totalorder %s16, 0
    %p77 = por %p75, %p76
    %p78 = scmp.ne.s32.totalorder %s64, %s65
    %p79 = scmp.eq.s32.totalorder %s17, 3
    %p80 = por %p78, %p79
    %p82 = scmp.ne.s32.totalorder %s65, %s81
    %p83 = scmp.eq.s32.totalorder %s17, 0
    %p84 = por %p82, %p83
    %s85 = ssub.s32 %s18, %s30
    %p86 = scmp.eq.s32.totalorder %s85, 0
    %s88 = sadd.s32 %s87, 1
    %s89 = scalar_select %p86, %s87, %s88
    %p92 = pneg %p86
    %p93 = scmp.eq.s32.totalorder %s11, 3
    %p94 = por %p92, %p93
    %p95 = scmp.ne.s32.totalorder %s87, %s90
    %p96 = scmp.eq.s32.totalorder %s11, 0
    %p97 = por %p95, %p96
    %p98 = scmp.ne.s32.totalorder %s87, %s90
    %p99 = scmp.eq.s32.totalorder %s16, 3
    %p100 = por %p98, %p99
    %p101 = scmp.ne.s32.totalorder %s90, %s91
    %p102 = scmp.eq.s32.totalorder %s16, 0
    %p103 = por %p101, %p102
    %p104 = scmp.ne.s32.totalorder %s90, %s91
    %p105 = scmp.eq.s32.totalorder %s17, 3
    %p106 = por %p104, %p105
    %p108 = scmp.ne.s32.totalorder %s91, %s107
    %p109 = scmp.eq.s32.totalorder %s17, 0
    %p110 = por %p108, %p109
    %s111 = ssub.s32 %s19, %s26
    %p112 = scmp.eq.s32.totalorder %s111, 0
    %s114 = sadd.s32 %s113, 1
    %s115 = scalar_select %p112, %s113, %s114
    %p118 = pneg %p112
    %p119 = scmp.eq.s32.totalorder %s11, 3
    %p120 = por %p118, %p119
    %p121 = scmp.ne.s32.totalorder %s113, %s116
    %p122 = scmp.eq.s32.totalorder %s11, 0
    %p123 = por %p121, %p122
    %p124 = scmp.ne.s32.totalorder %s113, %s116
    %p125 = scmp.eq.s32.totalorder %s16, 3
    %p126 = por %p124, %p125
    %p127 = scmp.ne.s32.totalorder %s116, %s117
    %p128 = scmp.eq.s32.totalorder %s16, 0
    %p129 = por %p127, %p128
    %p130 = scmp.ne.s32.totalorder %s116, %s117
    %p131 = scmp.eq.s32.totalorder %s17, 3
    %p132 = por %p130, %p131
    %p134 = scmp.ne.s32.totalorder %s117, %s133
    %p135 = scmp.eq.s32.totalorder %s17, 0
    %p136 = por %p134, %p135
    %s137 = ssub.s32 %s19, %s26
    %p138 = scmp.eq.s32.totalorder %s137, 0
    %s140 = sadd.s32 %s139, 1
    %s141 = scalar_select %p138, %s139, %s140
    %p144 = pneg %p138
    %p145 = scmp.eq.s32.totalorder %s11, 3
    %p146 = por %p144, %p145
    %p147 = scmp.ne.s32.totalorder %s139, %s142
    %p148 = scmp.eq.s32.totalorder %s11, 0
    %p149 = por %p147, %p148
    %p150 = scmp.ne.s32.totalorder %s139, %s142
    %p151 = scmp.eq.s32.totalorder %s16, 3
    %p152 = por %p150, %p151
    %p153 = scmp.ne.s32.totalorder %s142, %s143
    %p154 = scmp.eq.s32.totalorder %s16, 0
    %p155 = por %p153, %p154
    %p156 = scmp.ne.s32.totalorder %s142, %s143
    %p157 = scmp.eq.s32.totalorder %s17, 3
    %p158 = por %p156, %p157
    %p160 = scmp.ne.s32.totalorder %s143, %s159
    %p161 = scmp.eq.s32.totalorder %s17, 0
    %p162 = por %p160, %p161
    %s163 = ssub.s32 %s19, %s26
    %s164 = ssub.s32 %s18, %s30
    %s165 = sor.u32 %s163, %s164
    %p166 = scmp.eq.s32.totalorder %s165, 0
    %s168 = sadd.s32 %s167, 1
    %s169 = scalar_select %p166, %s167, %s168
    %p172 = pneg %p166
    %p173 = scmp.eq.s32.totalorder %s11, 3
    %p174 = por %p172, %p173
    %p175 = scmp.ne.s32.totalorder %s167, %s170
    %p176 = scmp.eq.s32.totalorder %s11, 0
    %p177 = por %p175, %p176
    %p178 = scmp.ne.s32.totalorder %s167, %s170
    %p179 = scmp.eq.s32.totalorder %s16, 3
    %p180 = por %p178, %p179
    %p181 = scmp.ne.s32.totalorder %s170, %s171
    %p182 = scmp.eq.s32.totalorder %s16, 0
    %p183 = por %p181, %p182
    %p184 = scmp.ne.s32.totalorder %s170, %s171
    %p185 = scmp.eq.s32.totalorder %s17, 3
    %p186 = por %p184, %p185
    %p188 = scmp.ne.s32.totalorder %s171, %s187
    %p189 = scmp.eq.s32.totalorder %s17, 0
    %p190 = por %p188, %p189
    %p191 = scmp.le.s32.totalorder 1, %s11
    %p192 = scmp.lt.s32.totalorder %s11, 5
    %p193 = pnand %p191, %p192
    %p194 = pneg %p193
    // Predicated region
    $region9: #{tpu_custom_call.1} parent=5 // pred_check
      _
    $region10: #{tpu_custom_call.1} parent=5 // pred_check_branch
      %196 = sbr.rel (%p193) target = $region12
    $region11: #{tpu_custom_call.1} parent=5 // pred_region
      %s197 = ssub.s32 %s11, 1
      // Predicated region
      $region13: #{tpu_custom_call.1} parent=11 // pred_check
        %p198 = pneg %p77
      $region14: #{tpu_custom_call.1} parent=11 // pred_check_branch
        %200 = sbr.rel (%p198) target = $region16
      $region15: #{tpu_custom_call.1} parent=11 // pred_region
        %p201 = scmp.lt.s32.totalorder %s20, 0
        %s202 = scalar_select %p201, %s20, 0
        %s203 = smul.addr %s202, 8
        %s204 = scalar_lea.vmem %s1, %s203
      $region16: #{tpu_custom_call.1} parent=11 // pred_fallthru
        _
      // Predicated region
      $region17: #{tpu_custom_call.1} parent=11 // pred_check
        %p205 = pneg %p103
      $region18: #{tpu_custom_call.1} parent=11 // pred_check_branch
        %207 = sbr.rel (%p205) target = $region20
      $region19: #{tpu_custom_call.1} parent=11 // pred_region
        %p208 = scmp.lt.s32.totalorder %s20, 0
        %s209 = scalar_select %p208, %s20, 0
        %s210 = smul.addr %s209, 8
        %s211 = scalar_lea.vmem %s2, %s210
      $region20: #{tpu_custom_call.1} parent=11 // pred_fallthru
        _
    $region12: #{tpu_custom_call.1} parent=5 // pred_fallthru
      _
    %p212 = scmp.lt.s32.totalorder %s11, 4
    // Predicated region
    $region21: #{tpu_custom_call.1} parent=5 // pred_check
      %p213 = pneg %p212
    $region22: #{tpu_custom_call.1} parent=5 // pred_check_branch
      %215 = sbr.rel (%p213) target = $region24
    $region23: #{tpu_custom_call.1} parent=5 // pred_region
      // Predicated region
      $region25: #{tpu_custom_call.1} parent=23 // pred_check
        %p216 = pneg %p45
      $region26: #{tpu_custom_call.1} parent=23 // pred_check_branch
        %218 = sbr.rel (%p216) target = $region28
      $region27: #{tpu_custom_call.1} parent=23 // pred_region
        %p219 = scmp.lt.s32.totalorder %s19, 3
        %s220 = scalar_select %p219, %s19, 3
        %p221 = scmp.lt.s32.totalorder %s18, 0
        %s222 = scalar_select %p221, %s18, 0
        %s223 = sadd.s32 %s222, %s220
        %s224 = smul.addr %s223, 8
        %s225 = scalar_lea.vmem %s0, %s224
      $region28: #{tpu_custom_call.1} parent=23 // pred_fallthru
        _
      // Predicated region
      $region29: #{tpu_custom_call.1} parent=23 // pred_check
        %p226 = pneg %p123
      $region30: #{tpu_custom_call.1} parent=23 // pred_check_branch
        %228 = sbr.rel (%p226) target = $region32
      $region31: #{tpu_custom_call.1} parent=23 // pred_region
        %p229 = scmp.lt.s32.totalorder %s19, 3
        %s230 = scalar_select %p229, %s19, 3
        %s231 = smul.addr %s230, 8
        %s232 = scalar_lea.vmem %s3, %s231
      $region32: #{tpu_custom_call.1} parent=23 // pred_fallthru
        _
      // Predicated region
      $region33: #{tpu_custom_call.1} parent=23 // pred_check
        %p233 = pneg %p149
      $region34: #{tpu_custom_call.1} parent=23 // pred_check_branch
        %235 = sbr.rel (%p233) target = $region36
      $region35: #{tpu_custom_call.1} parent=23 // pred_region
        %p236 = scmp.lt.s32.totalorder %s19, 3
        %s237 = scalar_select %p236, %s19, 3
        %s238 = smul.addr %s237, 2
        %s239 = smul.addr %s238, 8
        %s240 = scalar_lea.vmem %s4, %s239
      $region36: #{tpu_custom_call.1} parent=23 // pred_fallthru
        _
    $region24: #{tpu_custom_call.1} parent=5 // pred_fallthru
      _
    %p241 = scmp.le.s32.totalorder 1, %s11
    %p242 = scmp.lt.s32.totalorder %s11, 5
    %p243 = pnand %p241, %p242
    %p244 = pneg %p243
    // Predicated region
    $region37: #{tpu_custom_call.1} parent=5 // pred_check
      _
    $region38: #{tpu_custom_call.1} parent=5 // pred_check_branch
      %246 = sbr.rel (%p243) target = $region40
    $region39: #{tpu_custom_call.1} parent=5 // pred_region
      %s247 = ssub.s32 %s11, 1
      %p248 = scmp.lt.s32.totalorder %s21, 3
      %s249 = scalar_select %p248, %s21, 3
      %p250 = scmp.lt.s32.totalorder %s20, 0
      %s251 = scalar_select %p250, %s20, 0
      %s252 = sadd.s32 %s251, %s249
      %s253 = smul.addr %s252, 8
      %s254 = scalar_lea.vmem %s0, %s253
      %p255 = pneg %p51
      %p256 = pneg %p48
      %p257 = scmp.lt.s32.totalorder %s20, 0
      %s258 = scalar_select %p257, %s20, 0
      %s259 = smul.addr %s258, 8
      %s260 = scalar_lea.vmem %s1, %s259
      %p261 = pneg %p77
      %p262 = pneg %p74
      %p263 = scmp.lt.s32.totalorder %s20, 0
      %s264 = scalar_select %p263, %s20, 0
      %s265 = smul.addr %s264, 8
      %s266 = scalar_lea.vmem %s2, %s265
      %p267 = pneg %p103
      %p268 = pneg %p100
      %p269 = scmp.lt.s32.totalorder %s21, 3
      %s270 = scalar_select %p269, %s21, 3
      %s271 = smul.addr %s270, 8
      %s272 = scalar_lea.vmem %s3, %s271
      %p273 = pneg %p129
      %p274 = pneg %p126
      %p275 = scmp.lt.s32.totalorder %s21, 3
      %s276 = scalar_select %p275, %s21, 3
      %s277 = smul.addr %s276, 2
      %s278 = smul.addr %s277, 8
      %s279 = scalar_lea.vmem %s4, %s278
      %p280 = pneg %p155
      %p281 = pneg %p152
      %p282 = pneg %p183
      %p283 = pneg %p180
      %p284 = scmp.lt.s32.totalorder %s21, 3
      %s285 = scalar_select %p284, %s21, 3
      %p286 = scmp.lt.s32.totalorder %s20, 0
      %s287 = scalar_select %p286, %s20, 0
      %s288 = smul.addr %s285, 2
      %s289 = sadd.s32 %s287, %s288
      %s290 = smul.addr %s289, 8
      %s291 = scalar_lea.vmem %s5, %s290
      %p292 = scmp.lt.s32.totalorder %s21, 3
      %s293 = scalar_select %p292, %s21, 3
      %p294 = scmp.lt.s32.totalorder %s20, 0
      %s295 = scalar_select %p294, %s20, 0
      %s296 = sadd.s32 %s295, %s293
      %s297 = smul.addr %s296, 8
      %s298 = scalar_lea.vmem %s0, %s297
      %p299 = scmp.lt.s32.totalorder %s20, 0
      %s300 = scalar_select %p299, %s20, 0
      %s301 = smul.addr %s300, 8
      %s302 = scalar_lea.vmem %s1, %s301
      %p303 = scmp.lt.s32.totalorder %s20, 0
      %s304 = scalar_select %p303, %s20, 0
      %s305 = smul.addr %s304, 8
      %s306 = scalar_lea.vmem %s2, %s305
      %p307 = scmp.lt.s32.totalorder %s21, 3
      %s308 = scalar_select %p307, %s21, 3
      %s309 = smul.addr %s308, 8
      %s310 = scalar_lea.vmem %s3, %s309
      %p311 = scmp.lt.s32.totalorder %s21, 3
      %s312 = scalar_select %p311, %s21, 3
      %s313 = smul.addr %s312, 2
      %s314 = smul.addr %s313, 8
      %s315 = scalar_lea.vmem %s4, %s314
      %p316 = scmp.lt.s32.totalorder %s21, 3
      %s317 = scalar_select %p316, %s21, 3
      %p318 = scmp.lt.s32.totalorder %s20, 0
      %s319 = scalar_select %p318, %s20, 0
      %s320 = smul.addr %s317, 2
      %s321 = sadd.s32 %s319, %s320
      %s322 = smul.addr %s321, 8
      %s323 = scalar_lea.vmem %s5, %s322
      %v324 = vld [vmem:[%s298] sm:$0xff]
      %v325 = vld [vmem:[%s302] sm:$0xff]
      %v326 = vld [vmem:[%s306] sm:$0xff]
      %v327 = vld [vmem:[%s306 + $0x8] sm:$0xff]
      %v328 = vld [vmem:[%s306 + $0x10] sm:$0xff]
      %v329 = vld [vmem:[%s306 + $0x18] sm:$0xff]
      %v330 = vld [vmem:[%s310] sm:$0x1f]
      %v331 = vld [vmem:[%s315] sm:$0xff]
      %v332 = vld [vmem:[%s315 + $0x8] sm:$0xf]
      %v333 = vlaneseq
      %v334 = vshrl.u32 %v333, 7
      %v335 = vsub.s32 0, %v334
      %v336 = vrot.slane %v330, %v335
      %338 = vbcast.lane.b32.xlu0 %v336, 256
      %v339 = vpop.permute.xlu0 %338
      %s341 = sor.u32 256, 8
      %342 = vbcast.lane.b32.xlu0 %v336, %s341
      %v343 = vpop.permute.xlu0 %342
      %v344 = vlaneseq
      %v345 = vshrl.u32 %v344, 7
      %v346 = vsub.s32 0, %v345
      %v347 = vrot.slane %v339, %v346
      %v348 = vlaneseq
      %v349 = vshrl.u32 %v348, 7
      %v350 = vsub.s32 1, %v349
      %v351 = vrot.slane %v339, %v350
      %v352 = vlaneseq
      %v353 = vshrl.u32 %v352, 7
      %v354 = vsub.s32 2, %v353
      %v355 = vrot.slane %v339, %v354
      %v356 = vlaneseq
      %v357 = vshrl.u32 %v356, 7
      %v358 = vsub.s32 3, %v357
      %v359 = vrot.slane %v339, %v358
      %v360 = vlaneseq
      %v361 = vshrl.u32 %v360, 7
      %v362 = vsub.s32 4, %v361
      %v363 = vrot.slane %v339, %v362
      %v364 = vlaneseq
      %v365 = vshrl.u32 %v364, 7
      %v366 = vsub.s32 5, %v365
      %v367 = vrot.slane %v339, %v366
      %v368 = vlaneseq
      %v369 = vshrl.u32 %v368, 7
      %v370 = vsub.s32 6, %v369
      %v371 = vrot.slane %v339, %v370
      %v372 = vlaneseq
      %v373 = vshrl.u32 %v372, 7
      %v374 = vsub.s32 7, %v373
      %v375 = vrot.slane %v339, %v374
      %v376 = vlaneseq
      %v377 = vshrl.u32 %v376, 7
      %v378 = vsub.s32 0, %v377
      %v379 = vrot.slane %v343, %v378
      %v380 = vlaneseq
      %v381 = vshrl.u32 %v380, 7
      %v382 = vsub.s32 1, %v381
      %v383 = vrot.slane %v343, %v382
      %v384 = vlaneseq
      %v385 = vshrl.u32 %v384, 7
      %v386 = vsub.s32 2, %v385
      %v387 = vrot.slane %v343, %v386
      %v388 = vlaneseq
      %v389 = vshrl.u32 %v388, 7
      %v390 = vsub.s32 3, %v389
      %v391 = vrot.slane %v343, %v390
      %v392 = vlaneseq
      %v393 = vshrl.u32 %v392, 7
      %v394 = vsub.s32 2, %v393
      %v395 = vrot.slane %v330, %v394
      %397 = vbcast.lane.b32.xlu0 %v395, 256
      %v398 = vpop.permute.xlu0 %397
      %s400 = sor.u32 256, 8
      %401 = vbcast.lane.b32.xlu0 %v395, %s400
      %v402 = vpop.permute.xlu0 %401
      %v403 = vlaneseq
      %v404 = vshrl.u32 %v403, 7
      %v405 = vsub.s32 0, %v404
      %v406 = vrot.slane %v398, %v405
      %v407 = vlaneseq
      %v408 = vshrl.u32 %v407, 7
      %v409 = vsub.s32 1, %v408
      %v410 = vrot.slane %v398, %v409
      %v411 = vlaneseq
      %v412 = vshrl.u32 %v411, 7
      %v413 = vsub.s32 2, %v412
      %v414 = vrot.slane %v398, %v413
      %v415 = vlaneseq
      %v416 = vshrl.u32 %v415, 7
      %v417 = vsub.s32 3, %v416
      %v418 = vrot.slane %v398, %v417
      %v419 = vlaneseq
      %v420 = vshrl.u32 %v419, 7
      %v421 = vsub.s32 4, %v420
      %v422 = vrot.slane %v398, %v421
      %v423 = vlaneseq
      %v424 = vshrl.u32 %v423, 7
      %v425 = vsub.s32 5, %v424
      %v426 = vrot.slane %v398, %v425
      %v427 = vlaneseq
      %v428 = vshrl.u32 %v427, 7
      %v429 = vsub.s32 6, %v428
      %v430 = vrot.slane %v398, %v429
      %v431 = vlaneseq
      %v432 = vshrl.u32 %v431, 7
      %v433 = vsub.s32 7, %v432
      %v434 = vrot.slane %v398, %v433
      %v435 = vlaneseq
      %v436 = vshrl.u32 %v435, 7
      %v437 = vsub.s32 0, %v436
      %v438 = vrot.slane %v402, %v437
      %v439 = vlaneseq
      %v440 = vshrl.u32 %v439, 7
      %v441 = vsub.s32 1, %v440
      %v442 = vrot.slane %v402, %v441
      %v443 = vlaneseq
      %v444 = vshrl.u32 %v443, 7
      %v445 = vsub.s32 2, %v444
      %v446 = vrot.slane %v402, %v445
      %v447 = vlaneseq
      %v448 = vshrl.u32 %v447, 7
      %v449 = vsub.s32 3, %v448
      %v450 = vrot.slane %v402, %v449
      %v451 = vlaneseq
      %v452 = vshrl.u32 %v451, 7
      %v453 = vsub.s32 4, %v452
      %v454 = vrot.slane %v330, %v453
      %456 = vbcast.lane.b32.xlu0 %v454, 256
      %v457 = vpop.permute.xlu0 %456
      %s459 = sor.u32 256, 8
      %460 = vbcast.lane.b32.xlu0 %v454, %s459
      %v461 = vpop.permute.xlu0 %460
      %v462 = vsub.f32 %v325, %v347
      %v463 = vsub.f32 %v325, %v351
      %v464 = vsub.f32 %v325, %v355
      %v465 = vsub.f32 %v325, %v359
      %v466 = vsub.f32 %v325, %v363
      %v467 = vsub.f32 %v325, %v367
      %v468 = vsub.f32 %v325, %v371
      %v469 = vsub.f32 %v325, %v375
      %v470 = vsub.f32 %v325, %v379
      %v471 = vsub.f32 %v325, %v383
      %v472 = vsub.f32 %v325, %v387
      %v473 = vsub.f32 %v325, %v391
      %v474 = vmul.f32 %v462, %v462
      %v475 = vmul.f32 %v463, %v463
      %v476 = vmul.f32 %v464, %v464
      %v477 = vmul.f32 %v465, %v465
      %v478 = vmul.f32 %v466, %v466
      %v479 = vmul.f32 %v467, %v467
      %v480 = vmul.f32 %v468, %v468
      %v481 = vmul.f32 %v469, %v469
      %v482 = vmul.f32 %v470, %v470
      %v483 = vmul.f32 %v471, %v471
      %v484 = vmul.f32 %v472, %v472
      %v485 = vmul.f32 %v473, %v473
      %v486 = vmul.f32 %v474, %v406
      %v487 = vmul.f32 %v475, %v410
      %v488 = vmul.f32 %v476, %v414
      %v489 = vmul.f32 %v477, %v418
      %v490 = vmul.f32 %v478, %v422
      %v491 = vmul.f32 %v479, %v426
      %v492 = vmul.f32 %v480, %v430
      %v493 = vmul.f32 %v481, %v434
      %v494 = vmul.f32 %v482, %v438
      %v495 = vmul.f32 %v483, %v442
      %v496 = vmul.f32 %v484, %v446
      %v497 = vmul.f32 %v485, %v450
      %v498 = vlaneseq
      %v499 = vshrl.u32 %v498, 7
      %v500 = vsub.s32 1, %v499
      %v501 = vrot.slane %v330, %v500
      %503 = vbcast.lane.b32.xlu0 %v501, 256
      %v504 = vpop.permute.xlu0 %503
      %s506 = sor.u32 256, 8
      %507 = vbcast.lane.b32.xlu0 %v501, %s506
      %v508 = vpop.permute.xlu0 %507
      %v509 = vlaneseq
      %v510 = vshrl.u32 %v509, 7
      %v511 = vsub.s32 0, %v510
      %v512 = vrot.slane %v504, %v511
      %v513 = vlaneseq
      %v514 = vshrl.u32 %v513, 7
      %v515 = vsub.s32 1, %v514
      %v516 = vrot.slane %v504, %v515
      %v517 = vlaneseq
      %v518 = vshrl.u32 %v517, 7
      %v519 = vsub.s32 2, %v518
      %v520 = vrot.slane %v504, %v519
      %v521 = vlaneseq
      %v522 = vshrl.u32 %v521, 7
      %v523 = vsub.s32 3, %v522
      %v524 = vrot.slane %v504, %v523
      %v525 = vlaneseq
      %v526 = vshrl.u32 %v525, 7
      %v527 = vsub.s32 4, %v526
      %v528 = vrot.slane %v504, %v527
      %v529 = vlaneseq
      %v530 = vshrl.u32 %v529, 7
      %v531 = vsub.s32 5, %v530
      %v532 = vrot.slane %v504, %v531
      %v533 = vlaneseq
      %v534 = vshrl.u32 %v533, 7
      %v535 = vsub.s32 6, %v534
      %v536 = vrot.slane %v504, %v535
      %v537 = vlaneseq
      %v538 = vshrl.u32 %v537, 7
      %v539 = vsub.s32 7, %v538
      %v540 = vrot.slane %v504, %v539
      %v541 = vlaneseq
      %v542 = vshrl.u32 %v541, 7
      %v543 = vsub.s32 0, %v542
      %v544 = vrot.slane %v508, %v543
      %v545 = vlaneseq
      %v546 = vshrl.u32 %v545, 7
      %v547 = vsub.s32 1, %v546
      %v548 = vrot.slane %v508, %v547
      %v549 = vlaneseq
      %v550 = vshrl.u32 %v549, 7
      %v551 = vsub.s32 2, %v550
      %v552 = vrot.slane %v508, %v551
      %v553 = vlaneseq
      %v554 = vshrl.u32 %v553, 7
      %v555 = vsub.s32 3, %v554
      %v556 = vrot.slane %v508, %v555
      %v557 = vsub.f32 %v326, %v512
      %v558 = vsub.f32 %v326, %v516
      %v559 = vsub.f32 %v326, %v520
      %v560 = vsub.f32 %v326, %v524
      %v561 = vsub.f32 %v326, %v528
      %v562 = vsub.f32 %v326, %v532
      %v563 = vsub.f32 %v326, %v536
      %v564 = vsub.f32 %v326, %v540
      %v565 = vsub.f32 %v326, %v544
      %v566 = vsub.f32 %v326, %v548
      %v567 = vsub.f32 %v326, %v552
      %v568 = vsub.f32 %v326, %v556
      %v569 = vsub.f32 %v327, %v512
      %v570 = vsub.f32 %v327, %v516
      %v571 = vsub.f32 %v327, %v520
      %v572 = vsub.f32 %v327, %v524
      %v573 = vsub.f32 %v327, %v528
      %v574 = vsub.f32 %v327, %v532
      %v575 = vsub.f32 %v327, %v536
      %v576 = vsub.f32 %v327, %v540
      %v577 = vsub.f32 %v327, %v544
      %v578 = vsub.f32 %v327, %v548
      %v579 = vsub.f32 %v327, %v552
      %v580 = vsub.f32 %v327, %v556
      %v581 = vsub.f32 %v328, %v512
      %v582 = vsub.f32 %v328, %v516
      %v583 = vsub.f32 %v328, %v520
      %v584 = vsub.f32 %v328, %v524
      %v585 = vsub.f32 %v328, %v528
      %v586 = vsub.f32 %v328, %v532
      %v587 = vsub.f32 %v328, %v536
      %v588 = vsub.f32 %v328, %v540
      %v589 = vsub.f32 %v328, %v544
      %v590 = vsub.f32 %v328, %v548
      %v591 = vsub.f32 %v328, %v552
      %v592 = vsub.f32 %v328, %v556
      %v593 = vsub.f32 %v329, %v512
      %v594 = vsub.f32 %v329, %v516
      %v595 = vsub.f32 %v329, %v520
      %v596 = vsub.f32 %v329, %v524
      %v597 = vsub.f32 %v329, %v528
      %v598 = vsub.f32 %v329, %v532
      %v599 = vsub.f32 %v329, %v536
      %v600 = vsub.f32 %v329, %v540
      %v601 = vsub.f32 %v329, %v544
      %v602 = vsub.f32 %v329, %v548
      %v603 = vsub.f32 %v329, %v552
      %v604 = vsub.f32 %v329, %v556
      %v605 = vmul.f32 %v557, %v557
      %v606 = vmul.f32 %v558, %v558
      %v607 = vmul.f32 %v559, %v559
      %v608 = vmul.f32 %v560, %v560
      %v609 = vmul.f32 %v561, %v561
      %v610 = vmul.f32 %v562, %v562
      %v611 = vmul.f32 %v563, %v563
      %v612 = vmul.f32 %v564, %v564
      %v613 = vmul.f32 %v565, %v565
      %v614 = vmul.f32 %v566, %v566
      %v615 = vmul.f32 %v567, %v567
      %v616 = vmul.f32 %v568, %v568
      %v617 = vmul.f32 %v569, %v569
      %v618 = vmul.f32 %v570, %v570
      %v619 = vmul.f32 %v571, %v571
      %v620 = vmul.f32 %v572, %v572
      %v621 = vmul.f32 %v573, %v573
      %v622 = vmul.f32 %v574, %v574
      %v623 = vmul.f32 %v575, %v575
      %v624 = vmul.f32 %v576, %v576
      %v625 = vmul.f32 %v577, %v577
      %v626 = vmul.f32 %v578, %v578
      %v627 = vmul.f32 %v579, %v579
      %v628 = vmul.f32 %v580, %v580
      %v629 = vmul.f32 %v581, %v581
      %v630 = vmul.f32 %v582, %v582
      %v631 = vmul.f32 %v583, %v583
      %v632 = vmul.f32 %v584, %v584
      %v633 = vmul.f32 %v585, %v585
      %v634 = vmul.f32 %v586, %v586
      %v635 = vmul.f32 %v587, %v587
      %v636 = vmul.f32 %v588, %v588
      %v637 = vmul.f32 %v589, %v589
      %v638 = vmul.f32 %v590, %v590
      %v639 = vmul.f32 %v591, %v591
      %v640 = vmul.f32 %v592, %v592
      %v641 = vmul.f32 %v593, %v593
      %v642 = vmul.f32 %v594, %v594
      %v643 = vmul.f32 %v595, %v595
      %v644 = vmul.f32 %v596, %v596
      %v645 = vmul.f32 %v597, %v597
      %v646 = vmul.f32 %v598, %v598
      %v647 = vmul.f32 %v599, %v599
      %v648 = vmul.f32 %v600, %v600
      %v649 = vmul.f32 %v601, %v601
      %v650 = vmul.f32 %v602, %v602
      %v651 = vmul.f32 %v603, %v603
      %v652 = vmul.f32 %v604, %v604
      %v653 = vlaneseq
      %v654 = vshrl.u32 %v653, 7
      %v655 = vsub.s32 3, %v654
      %v656 = vrot.slane %v330, %v655
      %658 = vbcast.lane.b32.xlu0 %v656, 256
      %v659 = vpop.permute.xlu0 %658
      %s661 = sor.u32 256, 8
      %662 = vbcast.lane.b32.xlu0 %v656, %s661
      %v663 = vpop.permute.xlu0 %662
      %v664 = vlaneseq
      %v665 = vshrl.u32 %v664, 7
      %v666 = vsub.s32 0, %v665
      %v667 = vrot.slane %v659, %v666
      %v668 = vlaneseq
      %v669 = vshrl.u32 %v668, 7
      %v670 = vsub.s32 1, %v669
      %v671 = vrot.slane %v659, %v670
      %v672 = vlaneseq
      %v673 = vshrl.u32 %v672, 7
      %v674 = vsub.s32 2, %v673
      %v675 = vrot.slane %v659, %v674
      %v676 = vlaneseq
      %v677 = vshrl.u32 %v676, 7
      %v678 = vsub.s32 3, %v677
      %v679 = vrot.slane %v659, %v678
      %v680 = vlaneseq
      %v681 = vshrl.u32 %v680, 7
      %v682 = vsub.s32 4, %v681
      %v683 = vrot.slane %v659, %v682
      %v684 = vlaneseq
      %v685 = vshrl.u32 %v684, 7
      %v686 = vsub.s32 5, %v685
      %v687 = vrot.slane %v659, %v686
      %v688 = vlaneseq
      %v689 = vshrl.u32 %v688, 7
      %v690 = vsub.s32 6, %v689
      %v691 = vrot.slane %v659, %v690
      %v692 = vlaneseq
      %v693 = vshrl.u32 %v692, 7
      %v694 = vsub.s32 7, %v693
      %v695 = vrot.slane %v659, %v694
      %v696 = vlaneseq
      %v697 = vshrl.u32 %v696, 7
      %v698 = vsub.s32 0, %v697
      %v699 = vrot.slane %v663, %v698
      %v700 = vlaneseq
      %v701 = vshrl.u32 %v700, 7
      %v702 = vsub.s32 1, %v701
      %v703 = vrot.slane %v663, %v702
      %v704 = vlaneseq
      %v705 = vshrl.u32 %v704, 7
      %v706 = vsub.s32 2, %v705
      %v707 = vrot.slane %v663, %v706
      %v708 = vlaneseq
      %v709 = vshrl.u32 %v708, 7
      %v710 = vsub.s32 3, %v709
      %v711 = vrot.slane %v663, %v710
      %v712 = vmul.f32 %v605, %v667
      %v713 = vmul.f32 %v606, %v671
      %v714 = vmul.f32 %v607, %v675
      %v715 = vmul.f32 %v608, %v679
      %v716 = vmul.f32 %v609, %v683
      %v717 = vmul.f32 %v610, %v687
      %v718 = vmul.f32 %v611, %v691
      %v719 = vmul.f32 %v612, %v695
      %v720 = vmul.f32 %v613, %v699
      %v721 = vmul.f32 %v614, %v703
      %v722 = vmul.f32 %v615, %v707
      %v723 = vmul.f32 %v616, %v711
      %v724 = vmul.f32 %v617, %v667
      %v725 = vmul.f32 %v618, %v671
      %v726 = vmul.f32 %v619, %v675
      %v727 = vmul.f32 %v620, %v679
      %v728 = vmul.f32 %v621, %v683
      %v729 = vmul.f32 %v622, %v687
      %v730 = vmul.f32 %v623, %v691
      %v731 = vmul.f32 %v624, %v695
      %v732 = vmul.f32 %v625, %v699
      %v733 = vmul.f32 %v626, %v703
      %v734 = vmul.f32 %v627, %v707
      %v735 = vmul.f32 %v628, %v711
      %v736 = vmul.f32 %v629, %v667
      %v737 = vmul.f32 %v630, %v671
      %v738 = vmul.f32 %v631, %v675
      %v739 = vmul.f32 %v632, %v679
      %v740 = vmul.f32 %v633, %v683
      %v741 = vmul.f32 %v634, %v687
      %v742 = vmul.f32 %v635, %v691
      %v743 = vmul.f32 %v636, %v695
      %v744 = vmul.f32 %v637, %v699
      %v745 = vmul.f32 %v638, %v703
      %v746 = vmul.f32 %v639, %v707
      %v747 = vmul.f32 %v640, %v711
      %v748 = vmul.f32 %v641, %v667
      %v749 = vmul.f32 %v642, %v671
      %v750 = vmul.f32 %v643, %v675
      %v751 = vmul.f32 %v644, %v679
      %v752 = vmul.f32 %v645, %v683
      %v753 = vmul.f32 %v646, %v687
      %v754 = vmul.f32 %v647, %v691
      %v755 = vmul.f32 %v648, %v695
      %v756 = vmul.f32 %v649, %v699
      %v757 = vmul.f32 %v650, %v703
      %v758 = vmul.f32 %v651, %v707
      %v759 = vmul.f32 %v652, %v711
      %v760 = vadd.f32 %v486, %v712
      %v761 = vadd.f32 %v487, %v713
      %v762 = vadd.f32 %v488, %v714
      %v763 = vadd.f32 %v489, %v715
      %v764 = vadd.f32 %v490, %v716
      %v765 = vadd.f32 %v491, %v717
      %v766 = vadd.f32 %v492, %v718
      %v767 = vadd.f32 %v493, %v719
      %v768 = vadd.f32 %v494, %v720
      %v769 = vadd.f32 %v495, %v721
      %v770 = vadd.f32 %v496, %v722
      %v771 = vadd.f32 %v497, %v723
      %v772 = vadd.f32 %v486, %v724
      %v773 = vadd.f32 %v487, %v725
      %v774 = vadd.f32 %v488, %v726
      %v775 = vadd.f32 %v489, %v727
      %v776 = vadd.f32 %v490, %v728
      %v777 = vadd.f32 %v491, %v729
      %v778 = vadd.f32 %v492, %v730
      %v779 = vadd.f32 %v493, %v731
      %v780 = vadd.f32 %v494, %v732
      %v781 = vadd.f32 %v495, %v733
      %v782 = vadd.f32 %v496, %v734
      %v783 = vadd.f32 %v497, %v735
      %v784 = vadd.f32 %v486, %v736
      %v785 = vadd.f32 %v487, %v737
      %v786 = vadd.f32 %v488, %v738
      %v787 = vadd.f32 %v489, %v739
      %v788 = vadd.f32 %v490, %v740
      %v789 = vadd.f32 %v491, %v741
      %v790 = vadd.f32 %v492, %v742
      %v791 = vadd.f32 %v493, %v743
      %v792 = vadd.f32 %v494, %v744
      %v793 = vadd.f32 %v495, %v745
      %v794 = vadd.f32 %v496, %v746
      %v795 = vadd.f32 %v497, %v747
      %v796 = vadd.f32 %v486, %v748
      %v797 = vadd.f32 %v487, %v749
      %v798 = vadd.f32 %v488, %v750
      %v799 = vadd.f32 %v489, %v751
      %v800 = vadd.f32 %v490, %v752
      %v801 = vadd.f32 %v491, %v753
      %v802 = vadd.f32 %v492, %v754
      %v803 = vadd.f32 %v493, %v755
      %v804 = vadd.f32 %v494, %v756
      %v805 = vadd.f32 %v495, %v757
      %v806 = vadd.f32 %v496, %v758
      %v807 = vadd.f32 %v497, %v759
      %v808 = vsub.f32 0.0, %v760
      %v809 = vsub.f32 0.0, %v761
      %v810 = vsub.f32 0.0, %v762
      %v811 = vsub.f32 0.0, %v763
      %v812 = vsub.f32 0.0, %v764
      %v813 = vsub.f32 0.0, %v765
      %v814 = vsub.f32 0.0, %v766
      %v815 = vsub.f32 0.0, %v767
      %v816 = vsub.f32 0.0, %v768
      %v817 = vsub.f32 0.0, %v769
      %v818 = vsub.f32 0.0, %v770
      %v819 = vsub.f32 0.0, %v771
      %v820 = vsub.f32 0.0, %v772
      %v821 = vsub.f32 0.0, %v773
      %v822 = vsub.f32 0.0, %v774
      %v823 = vsub.f32 0.0, %v775
      %v824 = vsub.f32 0.0, %v776
      %v825 = vsub.f32 0.0, %v777
      %v826 = vsub.f32 0.0, %v778
      %v827 = vsub.f32 0.0, %v779
      %v828 = vsub.f32 0.0, %v780
      %v829 = vsub.f32 0.0, %v781
      %v830 = vsub.f32 0.0, %v782
      %v831 = vsub.f32 0.0, %v783
      %v832 = vsub.f32 0.0, %v784
      %v833 = vsub.f32 0.0, %v785
      %v834 = vsub.f32 0.0, %v786
      %v835 = vsub.f32 0.0, %v787
      %v836 = vsub.f32 0.0, %v788
      %v837 = vsub.f32 0.0, %v789
      %v838 = vsub.f32 0.0, %v790
      %v839 = vsub.f32 0.0, %v791
      %v840 = vsub.f32 0.0, %v792
      %v841 = vsub.f32 0.0, %v793
      %v842 = vsub.f32 0.0, %v794
      %v843 = vsub.f32 0.0, %v795
      %v844 = vsub.f32 0.0, %v796
      %v845 = vsub.f32 0.0, %v797
      %v846 = vsub.f32 0.0, %v798
      %v847 = vsub.f32 0.0, %v799
      %v848 = vsub.f32 0.0, %v800
      %v849 = vsub.f32 0.0, %v801
      %v850 = vsub.f32 0.0, %v802
      %v851 = vsub.f32 0.0, %v803
      %v852 = vsub.f32 0.0, %v804
      %v853 = vsub.f32 0.0, %v805
      %v854 = vsub.f32 0.0, %v806
      %v855 = vsub.f32 0.0, %v807
      %v856 = vmul.f32 %v808, 1.442695
      %v857 = vpow.pop %v856
      %v858 = vmul.f32 %v809, 1.442695
      %v859 = vpow.pop %v858
      %v860 = vmul.f32 %v810, 1.442695
      %v861 = vpow.pop %v860
      %v862 = vmul.f32 %v811, 1.442695
      %v863 = vpow.pop %v862
      %v864 = vmul.f32 %v812, 1.442695
      %v865 = vpow.pop %v864
      %v866 = vmul.f32 %v813, 1.442695
      %v867 = vpow.pop %v866
      %v868 = vmul.f32 %v814, 1.442695
      %v869 = vpow.pop %v868
      %v870 = vmul.f32 %v815, 1.442695
      %v871 = vpow.pop %v870
      %v872 = vmul.f32 %v816, 1.442695
      %v873 = vpow.pop %v872
      %v874 = vmul.f32 %v817, 1.442695
      %v875 = vpow.pop %v874
      %v876 = vmul.f32 %v818, 1.442695
      %v877 = vpow.pop %v876
      %v878 = vmul.f32 %v819, 1.442695
      %v879 = vpow.pop %v878
      %v880 = vmul.f32 %v820, 1.442695
      %v881 = vpow.pop %v880
      %v882 = vmul.f32 %v821, 1.442695
      %v883 = vpow.pop %v882
      %v884 = vmul.f32 %v822, 1.442695
      %v885 = vpow.pop %v884
      %v886 = vmul.f32 %v823, 1.442695
      %v887 = vpow.pop %v886
      %v888 = vmul.f32 %v824, 1.442695
      %v889 = vpow.pop %v888
      %v890 = vmul.f32 %v825, 1.442695
      %v891 = vpow.pop %v890
      %v892 = vmul.f32 %v826, 1.442695
      %v893 = vpow.pop %v892
      %v894 = vmul.f32 %v827, 1.442695
      %v895 = vpow.pop %v894
      %v896 = vmul.f32 %v828, 1.442695
      %v897 = vpow.pop %v896
      %v898 = vmul.f32 %v829, 1.442695
      %v899 = vpow.pop %v898
      %v900 = vmul.f32 %v830, 1.442695
      %v901 = vpow.pop %v900
      %v902 = vmul.f32 %v831, 1.442695
      %v903 = vpow.pop %v902
      %v904 = vmul.f32 %v832, 1.442695
      %v905 = vpow.pop %v904
      %v906 = vmul.f32 %v833, 1.442695
      %v907 = vpow.pop %v906
      %v908 = vmul.f32 %v834, 1.442695
      %v909 = vpow.pop %v908
      %v910 = vmul.f32 %v835, 1.442695
      %v911 = vpow.pop %v910
      %v912 = vmul.f32 %v836, 1.442695
      %v913 = vpow.pop %v912
      %v914 = vmul.f32 %v837, 1.442695
      %v915 = vpow.pop %v914
      %v916 = vmul.f32 %v838, 1.442695
      %v917 = vpow.pop %v916
      %v918 = vmul.f32 %v839, 1.442695
      %v919 = vpow.pop %v918
      %v920 = vmul.f32 %v840, 1.442695
      %v921 = vpow.pop %v920
      %v922 = vmul.f32 %v841, 1.442695
      %v923 = vpow.pop %v922
      %v924 = vmul.f32 %v842, 1.442695
      %v925 = vpow.pop %v924
      %v926 = vmul.f32 %v843, 1.442695
      %v927 = vpow.pop %v926
      %v928 = vmul.f32 %v844, 1.442695
      %v929 = vpow.pop %v928
      %v930 = vmul.f32 %v845, 1.442695
      %v931 = vpow.pop %v930
      %v932 = vmul.f32 %v846, 1.442695
      %v933 = vpow.pop %v932
      %v934 = vmul.f32 %v847, 1.442695
      %v935 = vpow.pop %v934
      %v936 = vmul.f32 %v848, 1.442695
      %v937 = vpow.pop %v936
      %v938 = vmul.f32 %v849, 1.442695
      %v939 = vpow.pop %v938
      %v940 = vmul.f32 %v850, 1.442695
      %v941 = vpow.pop %v940
      %v942 = vmul.f32 %v851, 1.442695
      %v943 = vpow.pop %v942
      %v944 = vmul.f32 %v852, 1.442695
      %v945 = vpow.pop %v944
      %v946 = vmul.f32 %v853, 1.442695
      %v947 = vpow.pop %v946
      %v948 = vmul.f32 %v854, 1.442695
      %v949 = vpow.pop %v948
      %v950 = vmul.f32 %v855, 1.442695
      %v951 = vpow.pop %v950
      %vm952 = vcmask 15360
      %v953 = vsel %vm952, %v857, 0.0
      %v954 = vrot.slane %v953, 4
      %v955 = vadd.f32 %v953, %v954
      %v956 = vrot.slane %v955, 2
      %v957 = vadd.f32 %v955, %v956
      %v958 = vrot.slane %v957, 1
      %v959 = vadd.f32 %v957, %v958
      %v960 = vsel %vm952, %v859, 0.0
      %v961 = vrot.slane %v960, 4
      %v962 = vadd.f32 %v960, %v961
      %v963 = vrot.slane %v962, 2
      %v964 = vadd.f32 %v962, %v963
      %v965 = vrot.slane %v964, 1
      %v966 = vadd.f32 %v964, %v965
      %v967 = vsel %vm952, %v861, 0.0
      %v968 = vrot.slane %v967, 4
      %v969 = vadd.f32 %v967, %v968
      %v970 = vrot.slane %v969, 2
      %v971 = vadd.f32 %v969, %v970
      %v972 = vrot.slane %v971, 1
      %v973 = vadd.f32 %v971, %v972
      %v974 = vsel %vm952, %v863, 0.0
      %v975 = vrot.slane %v974, 4
      %v976 = vadd.f32 %v974, %v975
      %v977 = vrot.slane %v976, 2
      %v978 = vadd.f32 %v976, %v977
      %v979 = vrot.slane %v978, 1
      %v980 = vadd.f32 %v978, %v979
      %v981 = vsel %vm952, %v865, 0.0
      %v982 = vrot.slane %v981, 4
      %v983 = vadd.f32 %v981, %v982
      %v984 = vrot.slane %v983, 2
      %v985 = vadd.f32 %v983, %v984
      %v986 = vrot.slane %v985, 1
      %v987 = vadd.f32 %v985, %v986
      %v988 = vsel %vm952, %v867, 0.0
      %v989 = vrot.slane %v988, 4
      %v990 = vadd.f32 %v988, %v989
      %v991 = vrot.slane %v990, 2
      %v992 = vadd.f32 %v990, %v991
      %v993 = vrot.slane %v992, 1
      %v994 = vadd.f32 %v992, %v993
      %v995 = vsel %vm952, %v869, 0.0
      %v996 = vrot.slane %v995, 4
      %v997 = vadd.f32 %v995, %v996
      %v998 = vrot.slane %v997, 2
      %v999 = vadd.f32 %v997, %v998
      %v1000 = vrot.slane %v999, 1
      %v1001 = vadd.f32 %v999, %v1000
      %v1002 = vsel %vm952, %v871, 0.0
      %v1003 = vrot.slane %v1002, 4
      %v1004 = vadd.f32 %v1002, %v1003
      %v1005 = vrot.slane %v1004, 2
      %v1006 = vadd.f32 %v1004, %v1005
      %v1007 = vrot.slane %v1006, 1
      %v1008 = vadd.f32 %v1006, %v1007
      %v1009 = vsel %vm952, %v873, 0.0
      %v1010 = vrot.slane %v1009, 4
      %v1011 = vadd.f32 %v1009, %v1010
      %v1012 = vrot.slane %v1011, 2
      %v1013 = vadd.f32 %v1011, %v1012
      %v1014 = vrot.slane %v1013, 1
      %v1015 = vadd.f32 %v1013, %v1014
      %v1016 = vsel %vm952, %v875, 0.0
      %v1017 = vrot.slane %v1016, 4
      %v1018 = vadd.f32 %v1016, %v1017
      %v1019 = vrot.slane %v1018, 2
      %v1020 = vadd.f32 %v1018, %v1019
      %v1021 = vrot.slane %v1020, 1
      %v1022 = vadd.f32 %v1020, %v1021
      %v1023 = vsel %vm952, %v877, 0.0
      %v1024 = vrot.slane %v1023, 4
      %v1025 = vadd.f32 %v1023, %v1024
      %v1026 = vrot.slane %v1025, 2
      %v1027 = vadd.f32 %v1025, %v1026
      %v1028 = vrot.slane %v1027, 1
      %v1029 = vadd.f32 %v1027, %v1028
      %v1030 = vsel %vm952, %v879, 0.0
      %v1031 = vrot.slane %v1030, 4
      %v1032 = vadd.f32 %v1030, %v1031
      %v1033 = vrot.slane %v1032, 2
      %v1034 = vadd.f32 %v1032, %v1033
      %v1035 = vrot.slane %v1034, 1
      %v1036 = vadd.f32 %v1034, %v1035
      %v1037 = vsel %vm952, %v881, 0.0
      %v1038 = vrot.slane %v1037, 4
      %v1039 = vadd.f32 %v1037, %v1038
      %v1040 = vrot.slane %v1039, 2
      %v1041 = vadd.f32 %v1039, %v1040
      %v1042 = vrot.slane %v1041, 1
      %v1043 = vadd.f32 %v1041, %v1042
      %v1044 = vsel %vm952, %v883, 0.0
      %v1045 = vrot.slane %v1044, 4
      %v1046 = vadd.f32 %v1044, %v1045
      %v1047 = vrot.slane %v1046, 2
      %v1048 = vadd.f32 %v1046, %v1047
      %v1049 = vrot.slane %v1048, 1
      %v1050 = vadd.f32 %v1048, %v1049
      %v1051 = vsel %vm952, %v885, 0.0
      %v1052 = vrot.slane %v1051, 4
      %v1053 = vadd.f32 %v1051, %v1052
      %v1054 = vrot.slane %v1053, 2
      %v1055 = vadd.f32 %v1053, %v1054
      %v1056 = vrot.slane %v1055, 1
      %v1057 = vadd.f32 %v1055, %v1056
      %v1058 = vsel %vm952, %v887, 0.0
      %v1059 = vrot.slane %v1058, 4
      %v1060 = vadd.f32 %v1058, %v1059
      %v1061 = vrot.slane %v1060, 2
      %v1062 = vadd.f32 %v1060, %v1061
      %v1063 = vrot.slane %v1062, 1
      %v1064 = vadd.f32 %v1062, %v1063
      %v1065 = vsel %vm952, %v889, 0.0
      %v1066 = vrot.slane %v1065, 4
      %v1067 = vadd.f32 %v1065, %v1066
      %v1068 = vrot.slane %v1067, 2
      %v1069 = vadd.f32 %v1067, %v1068
      %v1070 = vrot.slane %v1069, 1
      %v1071 = vadd.f32 %v1069, %v1070
      %v1072 = vsel %vm952, %v891, 0.0
      %v1073 = vrot.slane %v1072, 4
      %v1074 = vadd.f32 %v1072, %v1073
      %v1075 = vrot.slane %v1074, 2
      %v1076 = vadd.f32 %v1074, %v1075
      %v1077 = vrot.slane %v1076, 1
      %v1078 = vadd.f32 %v1076, %v1077
      %v1079 = vsel %vm952, %v893, 0.0
      %v1080 = vrot.slane %v1079, 4
      %v1081 = vadd.f32 %v1079, %v1080
      %v1082 = vrot.slane %v1081, 2
      %v1083 = vadd.f32 %v1081, %v1082
      %v1084 = vrot.slane %v1083, 1
      %v1085 = vadd.f32 %v1083, %v1084
      %v1086 = vsel %vm952, %v895, 0.0
      %v1087 = vrot.slane %v1086, 4
      %v1088 = vadd.f32 %v1086, %v1087
      %v1089 = vrot.slane %v1088, 2
      %v1090 = vadd.f32 %v1088, %v1089
      %v1091 = vrot.slane %v1090, 1
      %v1092 = vadd.f32 %v1090, %v1091
      %v1093 = vsel %vm952, %v897, 0.0
      %v1094 = vrot.slane %v1093, 4
      %v1095 = vadd.f32 %v1093, %v1094
      %v1096 = vrot.slane %v1095, 2
      %v1097 = vadd.f32 %v1095, %v1096
      %v1098 = vrot.slane %v1097, 1
      %v1099 = vadd.f32 %v1097, %v1098
      %v1100 = vsel %vm952, %v899, 0.0
      %v1101 = vrot.slane %v1100, 4
      %v1102 = vadd.f32 %v1100, %v1101
      %v1103 = vrot.slane %v1102, 2
      %v1104 = vadd.f32 %v1102, %v1103
      %v1105 = vrot.slane %v1104, 1
      %v1106 = vadd.f32 %v1104, %v1105
      %v1107 = vsel %vm952, %v901, 0.0
      %v1108 = vrot.slane %v1107, 4
      %v1109 = vadd.f32 %v1107, %v1108
      %v1110 = vrot.slane %v1109, 2
      %v1111 = vadd.f32 %v1109, %v1110
      %v1112 = vrot.slane %v1111, 1
      %v1113 = vadd.f32 %v1111, %v1112
      %v1114 = vsel %vm952, %v903, 0.0
      %v1115 = vrot.slane %v1114, 4
      %v1116 = vadd.f32 %v1114, %v1115
      %v1117 = vrot.slane %v1116, 2
      %v1118 = vadd.f32 %v1116, %v1117
      %v1119 = vrot.slane %v1118, 1
      %v1120 = vadd.f32 %v1118, %v1119
      %v1121 = vsel %vm952, %v905, 0.0
      %v1122 = vrot.slane %v1121, 4
      %v1123 = vadd.f32 %v1121, %v1122
      %v1124 = vrot.slane %v1123, 2
      %v1125 = vadd.f32 %v1123, %v1124
      %v1126 = vrot.slane %v1125, 1
      %v1127 = vadd.f32 %v1125, %v1126
      %v1128 = vsel %vm952, %v907, 0.0
      %v1129 = vrot.slane %v1128, 4
      %v1130 = vadd.f32 %v1128, %v1129
      %v1131 = vrot.slane %v1130, 2
      %v1132 = vadd.f32 %v1130, %v1131
      %v1133 = vrot.slane %v1132, 1
      %v1134 = vadd.f32 %v1132, %v1133
      %v1135 = vsel %vm952, %v909, 0.0
      %v1136 = vrot.slane %v1135, 4
      %v1137 = vadd.f32 %v1135, %v1136
      %v1138 = vrot.slane %v1137, 2
      %v1139 = vadd.f32 %v1137, %v1138
      %v1140 = vrot.slane %v1139, 1
      %v1141 = vadd.f32 %v1139, %v1140
      %v1142 = vsel %vm952, %v911, 0.0
      %v1143 = vrot.slane %v1142, 4
      %v1144 = vadd.f32 %v1142, %v1143
      %v1145 = vrot.slane %v1144, 2
      %v1146 = vadd.f32 %v1144, %v1145
      %v1147 = vrot.slane %v1146, 1
      %v1148 = vadd.f32 %v1146, %v1147
      %v1149 = vsel %vm952, %v913, 0.0
      %v1150 = vrot.slane %v1149, 4
      %v1151 = vadd.f32 %v1149, %v1150
      %v1152 = vrot.slane %v1151, 2
      %v1153 = vadd.f32 %v1151, %v1152
      %v1154 = vrot.slane %v1153, 1
      %v1155 = vadd.f32 %v1153, %v1154
      %v1156 = vsel %vm952, %v915, 0.0
      %v1157 = vrot.slane %v1156, 4
      %v1158 = vadd.f32 %v1156, %v1157
      %v1159 = vrot.slane %v1158, 2
      %v1160 = vadd.f32 %v1158, %v1159
      %v1161 = vrot.slane %v1160, 1
      %v1162 = vadd.f32 %v1160, %v1161
      %v1163 = vsel %vm952, %v917, 0.0
      %v1164 = vrot.slane %v1163, 4
      %v1165 = vadd.f32 %v1163, %v1164
      %v1166 = vrot.slane %v1165, 2
      %v1167 = vadd.f32 %v1165, %v1166
      %v1168 = vrot.slane %v1167, 1
      %v1169 = vadd.f32 %v1167, %v1168
      %v1170 = vsel %vm952, %v919, 0.0
      %v1171 = vrot.slane %v1170, 4
      %v1172 = vadd.f32 %v1170, %v1171
      %v1173 = vrot.slane %v1172, 2
      %v1174 = vadd.f32 %v1172, %v1173
      %v1175 = vrot.slane %v1174, 1
      %v1176 = vadd.f32 %v1174, %v1175
      %v1177 = vsel %vm952, %v921, 0.0
      %v1178 = vrot.slane %v1177, 4
      %v1179 = vadd.f32 %v1177, %v1178
      %v1180 = vrot.slane %v1179, 2
      %v1181 = vadd.f32 %v1179, %v1180
      %v1182 = vrot.slane %v1181, 1
      %v1183 = vadd.f32 %v1181, %v1182
      %v1184 = vsel %vm952, %v923, 0.0
      %v1185 = vrot.slane %v1184, 4
      %v1186 = vadd.f32 %v1184, %v1185
      %v1187 = vrot.slane %v1186, 2
      %v1188 = vadd.f32 %v1186, %v1187
      %v1189 = vrot.slane %v1188, 1
      %v1190 = vadd.f32 %v1188, %v1189
      %v1191 = vsel %vm952, %v925, 0.0
      %v1192 = vrot.slane %v1191, 4
      %v1193 = vadd.f32 %v1191, %v1192
      %v1194 = vrot.slane %v1193, 2
      %v1195 = vadd.f32 %v1193, %v1194
      %v1196 = vrot.slane %v1195, 1
      %v1197 = vadd.f32 %v1195, %v1196
      %v1198 = vsel %vm952, %v927, 0.0
      %v1199 = vrot.slane %v1198, 4
      %v1200 = vadd.f32 %v1198, %v1199
      %v1201 = vrot.slane %v1200, 2
      %v1202 = vadd.f32 %v1200, %v1201
      %v1203 = vrot.slane %v1202, 1
      %v1204 = vadd.f32 %v1202, %v1203
      %v1205 = vsel %vm952, %v929, 0.0
      %v1206 = vrot.slane %v1205, 4
      %v1207 = vadd.f32 %v1205, %v1206
      %v1208 = vrot.slane %v1207, 2
      %v1209 = vadd.f32 %v1207, %v1208
      %v1210 = vrot.slane %v1209, 1
      %v1211 = vadd.f32 %v1209, %v1210
      %v1212 = vsel %vm952, %v931, 0.0
      %v1213 = vrot.slane %v1212, 4
      %v1214 = vadd.f32 %v1212, %v1213
      %v1215 = vrot.slane %v1214, 2
      %v1216 = vadd.f32 %v1214, %v1215
      %v1217 = vrot.slane %v1216, 1
      %v1218 = vadd.f32 %v1216, %v1217
      %v1219 = vsel %vm952, %v933, 0.0
      %v1220 = vrot.slane %v1219, 4
      %v1221 = vadd.f32 %v1219, %v1220
      %v1222 = vrot.slane %v1221, 2
      %v1223 = vadd.f32 %v1221, %v1222
      %v1224 = vrot.slane %v1223, 1
      %v1225 = vadd.f32 %v1223, %v1224
      %v1226 = vsel %vm952, %v935, 0.0
      %v1227 = vrot.slane %v1226, 4
      %v1228 = vadd.f32 %v1226, %v1227
      %v1229 = vrot.slane %v1228, 2
      %v1230 = vadd.f32 %v1228, %v1229
      %v1231 = vrot.slane %v1230, 1
      %v1232 = vadd.f32 %v1230, %v1231
      %v1233 = vsel %vm952, %v937, 0.0
      %v1234 = vrot.slane %v1233, 4
      %v1235 = vadd.f32 %v1233, %v1234
      %v1236 = vrot.slane %v1235, 2
      %v1237 = vadd.f32 %v1235, %v1236
      %v1238 = vrot.slane %v1237, 1
      %v1239 = vadd.f32 %v1237, %v1238
      %v1240 = vsel %vm952, %v939, 0.0
      %v1241 = vrot.slane %v1240, 4
      %v1242 = vadd.f32 %v1240, %v1241
      %v1243 = vrot.slane %v1242, 2
      %v1244 = vadd.f32 %v1242, %v1243
      %v1245 = vrot.slane %v1244, 1
      %v1246 = vadd.f32 %v1244, %v1245
      %v1247 = vsel %vm952, %v941, 0.0
      %v1248 = vrot.slane %v1247, 4
      %v1249 = vadd.f32 %v1247, %v1248
      %v1250 = vrot.slane %v1249, 2
      %v1251 = vadd.f32 %v1249, %v1250
      %v1252 = vrot.slane %v1251, 1
      %v1253 = vadd.f32 %v1251, %v1252
      %v1254 = vsel %vm952, %v943, 0.0
      %v1255 = vrot.slane %v1254, 4
      %v1256 = vadd.f32 %v1254, %v1255
      %v1257 = vrot.slane %v1256, 2
      %v1258 = vadd.f32 %v1256, %v1257
      %v1259 = vrot.slane %v1258, 1
      %v1260 = vadd.f32 %v1258, %v1259
      %v1261 = vsel %vm952, %v945, 0.0
      %v1262 = vrot.slane %v1261, 4
      %v1263 = vadd.f32 %v1261, %v1262
      %v1264 = vrot.slane %v1263, 2
      %v1265 = vadd.f32 %v1263, %v1264
      %v1266 = vrot.slane %v1265, 1
      %v1267 = vadd.f32 %v1265, %v1266
      %v1268 = vsel %vm952, %v947, 0.0
      %v1269 = vrot.slane %v1268, 4
      %v1270 = vadd.f32 %v1268, %v1269
      %v1271 = vrot.slane %v1270, 2
      %v1272 = vadd.f32 %v1270, %v1271
      %v1273 = vrot.slane %v1272, 1
      %v1274 = vadd.f32 %v1272, %v1273
      %v1275 = vsel %vm952, %v949, 0.0
      %v1276 = vrot.slane %v1275, 4
      %v1277 = vadd.f32 %v1275, %v1276
      %v1278 = vrot.slane %v1277, 2
      %v1279 = vadd.f32 %v1277, %v1278
      %v1280 = vrot.slane %v1279, 1
      %v1281 = vadd.f32 %v1279, %v1280
      %v1282 = vsel %vm952, %v951, 0.0
      %v1283 = vrot.slane %v1282, 4
      %v1284 = vadd.f32 %v1282, %v1283
      %v1285 = vrot.slane %v1284, 2
      %v1286 = vadd.f32 %v1284, %v1285
      %v1287 = vrot.slane %v1286, 1
      %v1288 = vadd.f32 %v1286, %v1287
      %v1289 = vmul.f32 %v857, %v324
      %v1290 = vmul.f32 %v859, %v324
      %v1291 = vmul.f32 %v861, %v324
      %v1292 = vmul.f32 %v863, %v324
      %v1293 = vmul.f32 %v865, %v324
      %v1294 = vmul.f32 %v867, %v324
      %v1295 = vmul.f32 %v869, %v324
      %v1296 = vmul.f32 %v871, %v324
      %v1297 = vmul.f32 %v873, %v324
      %v1298 = vmul.f32 %v875, %v324
      %v1299 = vmul.f32 %v877, %v324
      %v1300 = vmul.f32 %v879, %v324
      %v1301 = vmul.f32 %v881, %v324
      %v1302 = vmul.f32 %v883, %v324
      %v1303 = vmul.f32 %v885, %v324
      %v1304 = vmul.f32 %v887, %v324
      %v1305 = vmul.f32 %v889, %v324
      %v1306 = vmul.f32 %v891, %v324
      %v1307 = vmul.f32 %v893, %v324
      %v1308 = vmul.f32 %v895, %v324
      %v1309 = vmul.f32 %v897, %v324
      %v1310 = vmul.f32 %v899, %v324
      %v1311 = vmul.f32 %v901, %v324
      %v1312 = vmul.f32 %v903, %v324
      %v1313 = vmul.f32 %v905, %v324
      %v1314 = vmul.f32 %v907, %v324
      %v1315 = vmul.f32 %v909, %v324
      %v1316 = vmul.f32 %v911, %v324
      %v1317 = vmul.f32 %v913, %v324
      %v1318 = vmul.f32 %v915, %v324
      %v1319 = vmul.f32 %v917, %v324
      %v1320 = vmul.f32 %v919, %v324
      %v1321 = vmul.f32 %v921, %v324
      %v1322 = vmul.f32 %v923, %v324
      %v1323 = vmul.f32 %v925, %v324
      %v1324 = vmul.f32 %v927, %v324
      %v1325 = vmul.f32 %v929, %v324
      %v1326 = vmul.f32 %v931, %v324
      %v1327 = vmul.f32 %v933, %v324
      %v1328 = vmul.f32 %v935, %v324
      %v1329 = vmul.f32 %v937, %v324
      %v1330 = vmul.f32 %v939, %v324
      %v1331 = vmul.f32 %v941, %v324
      %v1332 = vmul.f32 %v943, %v324
      %v1333 = vmul.f32 %v945, %v324
      %v1334 = vmul.f32 %v947, %v324
      %v1335 = vmul.f32 %v949, %v324
      %v1336 = vmul.f32 %v951, %v324
      %v1337 = vsel %vm952, %v1289, 0.0
      %v1338 = vrot.slane %v1337, 4
      %v1339 = vadd.f32 %v1337, %v1338
      %v1340 = vrot.slane %v1339, 2
      %v1341 = vadd.f32 %v1339, %v1340
      %v1342 = vrot.slane %v1341, 1
      %v1343 = vadd.f32 %v1341, %v1342
      %v1344 = vsel %vm952, %v1290, 0.0
      %v1345 = vrot.slane %v1344, 4
      %v1346 = vadd.f32 %v1344, %v1345
      %v1347 = vrot.slane %v1346, 2
      %v1348 = vadd.f32 %v1346, %v1347
      %v1349 = vrot.slane %v1348, 1
      %v1350 = vadd.f32 %v1348, %v1349
      %v1351 = vsel %vm952, %v1291, 0.0
      %v1352 = vrot.slane %v1351, 4
      %v1353 = vadd.f32 %v1351, %v1352
      %v1354 = vrot.slane %v1353, 2
      %v1355 = vadd.f32 %v1353, %v1354
      %v1356 = vrot.slane %v1355, 1
      %v1357 = vadd.f32 %v1355, %v1356
      %v1358 = vsel %vm952, %v1292, 0.0
      %v1359 = vrot.slane %v1358, 4
      %v1360 = vadd.f32 %v1358, %v1359
      %v1361 = vrot.slane %v1360, 2
      %v1362 = vadd.f32 %v1360, %v1361
      %v1363 = vrot.slane %v1362, 1
      %v1364 = vadd.f32 %v1362, %v1363
      %v1365 = vsel %vm952, %v1293, 0.0
      %v1366 = vrot.slane %v1365, 4
      %v1367 = vadd.f32 %v1365, %v1366
      %v1368 = vrot.slane %v1367, 2
      %v1369 = vadd.f32 %v1367, %v1368
      %v1370 = vrot.slane %v1369, 1
      %v1371 = vadd.f32 %v1369, %v1370
      %v1372 = vsel %vm952, %v1294, 0.0
      %v1373 = vrot.slane %v1372, 4
      %v1374 = vadd.f32 %v1372, %v1373
      %v1375 = vrot.slane %v1374, 2
      %v1376 = vadd.f32 %v1374, %v1375
      %v1377 = vrot.slane %v1376, 1
      %v1378 = vadd.f32 %v1376, %v1377
      %v1379 = vsel %vm952, %v1295, 0.0
      %v1380 = vrot.slane %v1379, 4
      %v1381 = vadd.f32 %v1379, %v1380
      %v1382 = vrot.slane %v1381, 2
      %v1383 = vadd.f32 %v1381, %v1382
      %v1384 = vrot.slane %v1383, 1
      %v1385 = vadd.f32 %v1383, %v1384
      %v1386 = vsel %vm952, %v1296, 0.0
      %v1387 = vrot.slane %v1386, 4
      %v1388 = vadd.f32 %v1386, %v1387
      %v1389 = vrot.slane %v1388, 2
      %v1390 = vadd.f32 %v1388, %v1389
      %v1391 = vrot.slane %v1390, 1
      %v1392 = vadd.f32 %v1390, %v1391
      %v1393 = vsel %vm952, %v1297, 0.0
      %v1394 = vrot.slane %v1393, 4
      %v1395 = vadd.f32 %v1393, %v1394
      %v1396 = vrot.slane %v1395, 2
      %v1397 = vadd.f32 %v1395, %v1396
      %v1398 = vrot.slane %v1397, 1
      %v1399 = vadd.f32 %v1397, %v1398
      %v1400 = vsel %vm952, %v1298, 0.0
      %v1401 = vrot.slane %v1400, 4
      %v1402 = vadd.f32 %v1400, %v1401
      %v1403 = vrot.slane %v1402, 2
      %v1404 = vadd.f32 %v1402, %v1403
      %v1405 = vrot.slane %v1404, 1
      %v1406 = vadd.f32 %v1404, %v1405
      %v1407 = vsel %vm952, %v1299, 0.0
      %v1408 = vrot.slane %v1407, 4
      %v1409 = vadd.f32 %v1407, %v1408
      %v1410 = vrot.slane %v1409, 2
      %v1411 = vadd.f32 %v1409, %v1410
      %v1412 = vrot.slane %v1411, 1
      %v1413 = vadd.f32 %v1411, %v1412
      %v1414 = vsel %vm952, %v1300, 0.0
      %v1415 = vrot.slane %v1414, 4
      %v1416 = vadd.f32 %v1414, %v1415
      %v1417 = vrot.slane %v1416, 2
      %v1418 = vadd.f32 %v1416, %v1417
      %v1419 = vrot.slane %v1418, 1
      %v1420 = vadd.f32 %v1418, %v1419
      %v1421 = vsel %vm952, %v1301, 0.0
      %v1422 = vrot.slane %v1421, 4
      %v1423 = vadd.f32 %v1421, %v1422
      %v1424 = vrot.slane %v1423, 2
      %v1425 = vadd.f32 %v1423, %v1424
      %v1426 = vrot.slane %v1425, 1
      %v1427 = vadd.f32 %v1425, %v1426
      %v1428 = vsel %vm952, %v1302, 0.0
      %v1429 = vrot.slane %v1428, 4
      %v1430 = vadd.f32 %v1428, %v1429
      %v1431 = vrot.slane %v1430, 2
      %v1432 = vadd.f32 %v1430, %v1431
      %v1433 = vrot.slane %v1432, 1
      %v1434 = vadd.f32 %v1432, %v1433
      %v1435 = vsel %vm952, %v1303, 0.0
      %v1436 = vrot.slane %v1435, 4
      %v1437 = vadd.f32 %v1435, %v1436
      %v1438 = vrot.slane %v1437, 2
      %v1439 = vadd.f32 %v1437, %v1438
      %v1440 = vrot.slane %v1439, 1
      %v1441 = vadd.f32 %v1439, %v1440
      %v1442 = vsel %vm952, %v1304, 0.0
      %v1443 = vrot.slane %v1442, 4
      %v1444 = vadd.f32 %v1442, %v1443
      %v1445 = vrot.slane %v1444, 2
      %v1446 = vadd.f32 %v1444, %v1445
      %v1447 = vrot.slane %v1446, 1
      %v1448 = vadd.f32 %v1446, %v1447
      %v1449 = vsel %vm952, %v1305, 0.0
      %v1450 = vrot.slane %v1449, 4
      %v1451 = vadd.f32 %v1449, %v1450
      %v1452 = vrot.slane %v1451, 2
      %v1453 = vadd.f32 %v1451, %v1452
      %v1454 = vrot.slane %v1453, 1
      %v1455 = vadd.f32 %v1453, %v1454
      %v1456 = vsel %vm952, %v1306, 0.0
      %v1457 = vrot.slane %v1456, 4
      %v1458 = vadd.f32 %v1456, %v1457
      %v1459 = vrot.slane %v1458, 2
      %v1460 = vadd.f32 %v1458, %v1459
      %v1461 = vrot.slane %v1460, 1
      %v1462 = vadd.f32 %v1460, %v1461
      %v1463 = vsel %vm952, %v1307, 0.0
      %v1464 = vrot.slane %v1463, 4
      %v1465 = vadd.f32 %v1463, %v1464
      %v1466 = vrot.slane %v1465, 2
      %v1467 = vadd.f32 %v1465, %v1466
      %v1468 = vrot.slane %v1467, 1
      %v1469 = vadd.f32 %v1467, %v1468
      %v1470 = vsel %vm952, %v1308, 0.0
      %v1471 = vrot.slane %v1470, 4
      %v1472 = vadd.f32 %v1470, %v1471
      %v1473 = vrot.slane %v1472, 2
      %v1474 = vadd.f32 %v1472, %v1473
      %v1475 = vrot.slane %v1474, 1
      %v1476 = vadd.f32 %v1474, %v1475
      %v1477 = vsel %vm952, %v1309, 0.0
      %v1478 = vrot.slane %v1477, 4
      %v1479 = vadd.f32 %v1477, %v1478
      %v1480 = vrot.slane %v1479, 2
      %v1481 = vadd.f32 %v1479, %v1480
      %v1482 = vrot.slane %v1481, 1
      %v1483 = vadd.f32 %v1481, %v1482
      %v1484 = vsel %vm952, %v1310, 0.0
      %v1485 = vrot.slane %v1484, 4
      %v1486 = vadd.f32 %v1484, %v1485
      %v1487 = vrot.slane %v1486, 2
      %v1488 = vadd.f32 %v1486, %v1487
      %v1489 = vrot.slane %v1488, 1
      %v1490 = vadd.f32 %v1488, %v1489
      %v1491 = vsel %vm952, %v1311, 0.0
      %v1492 = vrot.slane %v1491, 4
      %v1493 = vadd.f32 %v1491, %v1492
      %v1494 = vrot.slane %v1493, 2
      %v1495 = vadd.f32 %v1493, %v1494
      %v1496 = vrot.slane %v1495, 1
      %v1497 = vadd.f32 %v1495, %v1496
      %v1498 = vsel %vm952, %v1312, 0.0
      %v1499 = vrot.slane %v1498, 4
      %v1500 = vadd.f32 %v1498, %v1499
      %v1501 = vrot.slane %v1500, 2
      %v1502 = vadd.f32 %v1500, %v1501
      %v1503 = vrot.slane %v1502, 1
      %v1504 = vadd.f32 %v1502, %v1503
      %v1505 = vsel %vm952, %v1313, 0.0
      %v1506 = vrot.slane %v1505, 4
      %v1507 = vadd.f32 %v1505, %v1506
      %v1508 = vrot.slane %v1507, 2
      %v1509 = vadd.f32 %v1507, %v1508
      %v1510 = vrot.slane %v1509, 1
      %v1511 = vadd.f32 %v1509, %v1510
      %v1512 = vsel %vm952, %v1314, 0.0
      %v1513 = vrot.slane %v1512, 4
      %v1514 = vadd.f32 %v1512, %v1513
      %v1515 = vrot.slane %v1514, 2
      %v1516 = vadd.f32 %v1514, %v1515
      %v1517 = vrot.slane %v1516, 1
      %v1518 = vadd.f32 %v1516, %v1517
      %v1519 = vsel %vm952, %v1315, 0.0
      %v1520 = vrot.slane %v1519, 4
      %v1521 = vadd.f32 %v1519, %v1520
      %v1522 = vrot.slane %v1521, 2
      %v1523 = vadd.f32 %v1521, %v1522
      %v1524 = vrot.slane %v1523, 1
      %v1525 = vadd.f32 %v1523, %v1524
      %v1526 = vsel %vm952, %v1316, 0.0
      %v1527 = vrot.slane %v1526, 4
      %v1528 = vadd.f32 %v1526, %v1527
      %v1529 = vrot.slane %v1528, 2
      %v1530 = vadd.f32 %v1528, %v1529
      %v1531 = vrot.slane %v1530, 1
      %v1532 = vadd.f32 %v1530, %v1531
      %v1533 = vsel %vm952, %v1317, 0.0
      %v1534 = vrot.slane %v1533, 4
      %v1535 = vadd.f32 %v1533, %v1534
      %v1536 = vrot.slane %v1535, 2
      %v1537 = vadd.f32 %v1535, %v1536
      %v1538 = vrot.slane %v1537, 1
      %v1539 = vadd.f32 %v1537, %v1538
      %v1540 = vsel %vm952, %v1318, 0.0
      %v1541 = vrot.slane %v1540, 4
      %v1542 = vadd.f32 %v1540, %v1541
      %v1543 = vrot.slane %v1542, 2
      %v1544 = vadd.f32 %v1542, %v1543
      %v1545 = vrot.slane %v1544, 1
      %v1546 = vadd.f32 %v1544, %v1545
      %v1547 = vsel %vm952, %v1319, 0.0
      %v1548 = vrot.slane %v1547, 4
      %v1549 = vadd.f32 %v1547, %v1548
      %v1550 = vrot.slane %v1549, 2
      %v1551 = vadd.f32 %v1549, %v1550
      %v1552 = vrot.slane %v1551, 1
      %v1553 = vadd.f32 %v1551, %v1552
      %v1554 = vsel %vm952, %v1320, 0.0
      %v1555 = vrot.slane %v1554, 4
      %v1556 = vadd.f32 %v1554, %v1555
      %v1557 = vrot.slane %v1556, 2
      %v1558 = vadd.f32 %v1556, %v1557
      %v1559 = vrot.slane %v1558, 1
      %v1560 = vadd.f32 %v1558, %v1559
      %v1561 = vsel %vm952, %v1321, 0.0
      %v1562 = vrot.slane %v1561, 4
      %v1563 = vadd.f32 %v1561, %v1562
      %v1564 = vrot.slane %v1563, 2
      %v1565 = vadd.f32 %v1563, %v1564
      %v1566 = vrot.slane %v1565, 1
      %v1567 = vadd.f32 %v1565, %v1566
      %v1568 = vsel %vm952, %v1322, 0.0
      %v1569 = vrot.slane %v1568, 4
      %v1570 = vadd.f32 %v1568, %v1569
      %v1571 = vrot.slane %v1570, 2
      %v1572 = vadd.f32 %v1570, %v1571
      %v1573 = vrot.slane %v1572, 1
      %v1574 = vadd.f32 %v1572, %v1573
      %v1575 = vsel %vm952, %v1323, 0.0
      %v1576 = vrot.slane %v1575, 4
      %v1577 = vadd.f32 %v1575, %v1576
      %v1578 = vrot.slane %v1577, 2
      %v1579 = vadd.f32 %v1577, %v1578
      %v1580 = vrot.slane %v1579, 1
      %v1581 = vadd.f32 %v1579, %v1580
      %v1582 = vsel %vm952, %v1324, 0.0
      %v1583 = vrot.slane %v1582, 4
      %v1584 = vadd.f32 %v1582, %v1583
      %v1585 = vrot.slane %v1584, 2
      %v1586 = vadd.f32 %v1584, %v1585
      %v1587 = vrot.slane %v1586, 1
      %v1588 = vadd.f32 %v1586, %v1587
      %v1589 = vsel %vm952, %v1325, 0.0
      %v1590 = vrot.slane %v1589, 4
      %v1591 = vadd.f32 %v1589, %v1590
      %v1592 = vrot.slane %v1591, 2
      %v1593 = vadd.f32 %v1591, %v1592
      %v1594 = vrot.slane %v1593, 1
      %v1595 = vadd.f32 %v1593, %v1594
      %v1596 = vsel %vm952, %v1326, 0.0
      %v1597 = vrot.slane %v1596, 4
      %v1598 = vadd.f32 %v1596, %v1597
      %v1599 = vrot.slane %v1598, 2
      %v1600 = vadd.f32 %v1598, %v1599
      %v1601 = vrot.slane %v1600, 1
      %v1602 = vadd.f32 %v1600, %v1601
      %v1603 = vsel %vm952, %v1327, 0.0
      %v1604 = vrot.slane %v1603, 4
      %v1605 = vadd.f32 %v1603, %v1604
      %v1606 = vrot.slane %v1605, 2
      %v1607 = vadd.f32 %v1605, %v1606
      %v1608 = vrot.slane %v1607, 1
      %v1609 = vadd.f32 %v1607, %v1608
      %v1610 = vsel %vm952, %v1328, 0.0
      %v1611 = vrot.slane %v1610, 4
      %v1612 = vadd.f32 %v1610, %v1611
      %v1613 = vrot.slane %v1612, 2
      %v1614 = vadd.f32 %v1612, %v1613
      %v1615 = vrot.slane %v1614, 1
      %v1616 = vadd.f32 %v1614, %v1615
      %v1617 = vsel %vm952, %v1329, 0.0
      %v1618 = vrot.slane %v1617, 4
      %v1619 = vadd.f32 %v1617, %v1618
      %v1620 = vrot.slane %v1619, 2
      %v1621 = vadd.f32 %v1619, %v1620
      %v1622 = vrot.slane %v1621, 1
      %v1623 = vadd.f32 %v1621, %v1622
      %v1624 = vsel %vm952, %v1330, 0.0
      %v1625 = vrot.slane %v1624, 4
      %v1626 = vadd.f32 %v1624, %v1625
      %v1627 = vrot.slane %v1626, 2
      %v1628 = vadd.f32 %v1626, %v1627
      %v1629 = vrot.slane %v1628, 1
      %v1630 = vadd.f32 %v1628, %v1629
      %v1631 = vsel %vm952, %v1331, 0.0
      %v1632 = vrot.slane %v1631, 4
      %v1633 = vadd.f32 %v1631, %v1632
      %v1634 = vrot.slane %v1633, 2
      %v1635 = vadd.f32 %v1633, %v1634
      %v1636 = vrot.slane %v1635, 1
      %v1637 = vadd.f32 %v1635, %v1636
      %v1638 = vsel %vm952, %v1332, 0.0
      %v1639 = vrot.slane %v1638, 4
      %v1640 = vadd.f32 %v1638, %v1639
      %v1641 = vrot.slane %v1640, 2
      %v1642 = vadd.f32 %v1640, %v1641
      %v1643 = vrot.slane %v1642, 1
      %v1644 = vadd.f32 %v1642, %v1643
      %v1645 = vsel %vm952, %v1333, 0.0
      %v1646 = vrot.slane %v1645, 4
      %v1647 = vadd.f32 %v1645, %v1646
      %v1648 = vrot.slane %v1647, 2
      %v1649 = vadd.f32 %v1647, %v1648
      %v1650 = vrot.slane %v1649, 1
      %v1651 = vadd.f32 %v1649, %v1650
      %v1652 = vsel %vm952, %v1334, 0.0
      %v1653 = vrot.slane %v1652, 4
      %v1654 = vadd.f32 %v1652, %v1653
      %v1655 = vrot.slane %v1654, 2
      %v1656 = vadd.f32 %v1654, %v1655
      %v1657 = vrot.slane %v1656, 1
      %v1658 = vadd.f32 %v1656, %v1657
      %v1659 = vsel %vm952, %v1335, 0.0
      %v1660 = vrot.slane %v1659, 4
      %v1661 = vadd.f32 %v1659, %v1660
      %v1662 = vrot.slane %v1661, 2
      %v1663 = vadd.f32 %v1661, %v1662
      %v1664 = vrot.slane %v1663, 1
      %v1665 = vadd.f32 %v1663, %v1664
      %v1666 = vsel %vm952, %v1336, 0.0
      %v1667 = vrot.slane %v1666, 4
      %v1668 = vadd.f32 %v1666, %v1667
      %v1669 = vrot.slane %v1668, 2
      %v1670 = vadd.f32 %v1668, %v1669
      %v1671 = vrot.slane %v1670, 1
      %v1672 = vadd.f32 %v1670, %v1671
      %v1673 = vadd.f32 %v959, 1e-05
      %v1674 = vadd.f32 %v966, 1e-05
      %v1675 = vadd.f32 %v973, 1e-05
      %v1676 = vadd.f32 %v980, 1e-05
      %v1677 = vadd.f32 %v987, 1e-05
      %v1678 = vadd.f32 %v994, 1e-05
      %v1679 = vadd.f32 %v1001, 1e-05
      %v1680 = vadd.f32 %v1008, 1e-05
      %v1681 = vadd.f32 %v1015, 1e-05
      %v1682 = vadd.f32 %v1022, 1e-05
      %v1683 = vadd.f32 %v1029, 1e-05
      %v1684 = vadd.f32 %v1036, 1e-05
      %v1685 = vadd.f32 %v1043, 1e-05
      %v1686 = vadd.f32 %v1050, 1e-05
      %v1687 = vadd.f32 %v1057, 1e-05
      %v1688 = vadd.f32 %v1064, 1e-05
      %v1689 = vadd.f32 %v1071, 1e-05
      %v1690 = vadd.f32 %v1078, 1e-05
      %v1691 = vadd.f32 %v1085, 1e-05
      %v1692 = vadd.f32 %v1092, 1e-05
      %v1693 = vadd.f32 %v1099, 1e-05
      %v1694 = vadd.f32 %v1106, 1e-05
      %v1695 = vadd.f32 %v1113, 1e-05
      %v1696 = vadd.f32 %v1120, 1e-05
      %v1697 = vadd.f32 %v1127, 1e-05
      %v1698 = vadd.f32 %v1134, 1e-05
      %v1699 = vadd.f32 %v1141, 1e-05
      %v1700 = vadd.f32 %v1148, 1e-05
      %v1701 = vadd.f32 %v1155, 1e-05
      %v1702 = vadd.f32 %v1162, 1e-05
      %v1703 = vadd.f32 %v1169, 1e-05
      %v1704 = vadd.f32 %v1176, 1e-05
      %v1705 = vadd.f32 %v1183, 1e-05
      %v1706 = vadd.f32 %v1190, 1e-05
      %v1707 = vadd.f32 %v1197, 1e-05
      %v1708 = vadd.f32 %v1204, 1e-05
      %v1709 = vadd.f32 %v1211, 1e-05
      %v1710 = vadd.f32 %v1218, 1e-05
      %v1711 = vadd.f32 %v1225, 1e-05
      %v1712 = vadd.f32 %v1232, 1e-05
      %v1713 = vadd.f32 %v1239, 1e-05
      %v1714 = vadd.f32 %v1246, 1e-05
      %v1715 = vadd.f32 %v1253, 1e-05
      %v1716 = vadd.f32 %v1260, 1e-05
      %v1717 = vadd.f32 %v1267, 1e-05
      %v1718 = vadd.f32 %v1274, 1e-05
      %v1719 = vadd.f32 %v1281, 1e-05
      %v1720 = vadd.f32 %v1288, 1e-05
      %v1721 = vrcp.pop %v1673
      %v1722 = vmul.f32 %v1343, %v1721
      %v1723 = vrcp.pop %v1674
      %v1724 = vmul.f32 %v1350, %v1723
      %v1725 = vrcp.pop %v1675
      %v1726 = vmul.f32 %v1357, %v1725
      %v1727 = vrcp.pop %v1676
      %v1728 = vmul.f32 %v1364, %v1727
      %v1729 = vrcp.pop %v1677
      %v1730 = vmul.f32 %v1371, %v1729
      %v1731 = vrcp.pop %v1678
      %v1732 = vmul.f32 %v1378, %v1731
      %v1733 = vrcp.pop %v1679
      %v1734 = vmul.f32 %v1385, %v1733
      %v1735 = vrcp.pop %v1680
      %v1736 = vmul.f32 %v1392, %v1735
      %v1737 = vrcp.pop %v1681
      %v1738 = vmul.f32 %v1399, %v1737
      %v1739 = vrcp.pop %v1682
      %v1740 = vmul.f32 %v1406, %v1739
      %v1741 = vrcp.pop %v1683
      %v1742 = vmul.f32 %v1413, %v1741
      %v1743 = vrcp.pop %v1684
      %v1744 = vmul.f32 %v1420, %v1743
      %v1745 = vrcp.pop %v1685
      %v1746 = vmul.f32 %v1427, %v1745
      %v1747 = vrcp.pop %v1686
      %v1748 = vmul.f32 %v1434, %v1747
      %v1749 = vrcp.pop %v1687
      %v1750 = vmul.f32 %v1441, %v1749
      %v1751 = vrcp.pop %v1688
      %v1752 = vmul.f32 %v1448, %v1751
      %v1753 = vrcp.pop %v1689
      %v1754 = vmul.f32 %v1455, %v1753
      %v1755 = vrcp.pop %v1690
      %v1756 = vmul.f32 %v1462, %v1755
      %v1757 = vrcp.pop %v1691
      %v1758 = vmul.f32 %v1469, %v1757
      %v1759 = vrcp.pop %v1692
      %v1760 = vmul.f32 %v1476, %v1759
      %v1761 = vrcp.pop %v1693
      %v1762 = vmul.f32 %v1483, %v1761
      %v1763 = vrcp.pop %v1694
      %v1764 = vmul.f32 %v1490, %v1763
      %v1765 = vrcp.pop %v1695
      %v1766 = vmul.f32 %v1497, %v1765
      %v1767 = vrcp.pop %v1696
      %v1768 = vmul.f32 %v1504, %v1767
      %v1769 = vrcp.pop %v1697
      %v1770 = vmul.f32 %v1511, %v1769
      %v1771 = vrcp.pop %v1698
      %v1772 = vmul.f32 %v1518, %v1771
      %v1773 = vrcp.pop %v1699
      %v1774 = vmul.f32 %v1525, %v1773
      %v1775 = vrcp.pop %v1700
      %v1776 = vmul.f32 %v1532, %v1775
      %v1777 = vrcp.pop %v1701
      %v1778 = vmul.f32 %v1539, %v1777
      %v1779 = vrcp.pop %v1702
      %v1780 = vmul.f32 %v1546, %v1779
      %v1781 = vrcp.pop %v1703
      %v1782 = vmul.f32 %v1553, %v1781
      %v1783 = vrcp.pop %v1704
      %v1784 = vmul.f32 %v1560, %v1783
      %v1785 = vrcp.pop %v1705
      %v1786 = vmul.f32 %v1567, %v1785
      %v1787 = vrcp.pop %v1706
      %v1788 = vmul.f32 %v1574, %v1787
      %v1789 = vrcp.pop %v1707
      %v1790 = vmul.f32 %v1581, %v1789
      %v1791 = vrcp.pop %v1708
      %v1792 = vmul.f32 %v1588, %v1791
      %v1793 = vrcp.pop %v1709
      %v1794 = vmul.f32 %v1595, %v1793
      %v1795 = vrcp.pop %v1710
      %v1796 = vmul.f32 %v1602, %v1795
      %v1797 = vrcp.pop %v1711
      %v1798 = vmul.f32 %v1609, %v1797
      %v1799 = vrcp.pop %v1712
      %v1800 = vmul.f32 %v1616, %v1799
      %v1801 = vrcp.pop %v1713
      %v1802 = vmul.f32 %v1623, %v1801
      %v1803 = vrcp.pop %v1714
      %v1804 = vmul.f32 %v1630, %v1803
      %v1805 = vrcp.pop %v1715
      %v1806 = vmul.f32 %v1637, %v1805
      %v1807 = vrcp.pop %v1716
      %v1808 = vmul.f32 %v1644, %v1807
      %v1809 = vrcp.pop %v1717
      %v1810 = vmul.f32 %v1651, %v1809
      %v1811 = vrcp.pop %v1718
      %v1812 = vmul.f32 %v1658, %v1811
      %v1813 = vrcp.pop %v1719
      %v1814 = vmul.f32 %v1665, %v1813
      %v1815 = vrcp.pop %v1720
      %v1816 = vmul.f32 %v1672, %v1815
      %vm1829 = vcmask 1041409
      %v1830 = vsel %vm1829, %v1724, %v1722
      %vm1831 = vcmask 1042434
      %v1832 = vsel %vm1831, %v1726, %v1830
      %vm1833 = vcmask 1043459
      %v1834 = vsel %vm1833, %v1728, %v1832
      %vm1835 = vcmask 1044484
      %v1836 = vsel %vm1835, %v1730, %v1834
      %vm1837 = vcmask 1045509
      %v1838 = vsel %vm1837, %v1732, %v1836
      %vm1839 = vcmask 1046534
      %v1840 = vsel %vm1839, %v1734, %v1838
      %vm1841 = vcmask 1047559
      %v1842 = vsel %vm1841, %v1736, %v1840
      %v1843 = vsel %vm1829, %v1740, %v1738
      %v1844 = vsel %vm1831, %v1742, %v1843
      %v1845 = vsel %vm1833, %v1744, %v1844
      %vm1847 = vcmask 97280
      %v1849 = vsel %vm1847, %v331, 0
      %v1852 = vsel %vm1847, %v332, 0
      %vm1854 = vcmask 1043456
      %v1855 = vsel %vm1854, %v1845, 0
      %1857 = vmatprep.subr.mxu0 0.0
      %1858 = vmatpush1.msra.mxu0 0.0
      %1859 = vmatprep.subr.mxu0 0.0
      %1860 = vmatpush1.msra.mxu0 0.0
      %1861 = vmatprep.subr.mxu0 0.0
      %1862 = vmatpush1.msra.mxu0 0.0
      %1863 = vmatprep.subr.mxu0 0.0
      %1864 = vmatpush1.msra.mxu0 0.0
      %1865 = vmatprep.subr.mxu0 0.0
      %1866 = vmatpush1.msra.mxu0 0.0
      %1867 = vmatprep.subr.mxu0 0.0
      %1868 = vmatpush1.msra.mxu0 0.0
      %1869 = vmatprep.subr.mxu0 0.0
      %1870 = vmatpush1.msra.mxu0 0.0
      %1871 = vmatprep.subr.mxu0 0.0
      %1872 = vmatpush1.msra.mxu0 0.0
      %1873 = vmatprep.subr.mxu0 0.0
      %1874 = vmatpush1.msra.mxu0 0.0
      %1875 = vmatprep.subr.mxu0 0.0
      %1876 = vmatpush1.msra.mxu0 0.0
      %1877 = vmatprep.subr.mxu0 0.0
      %1878 = vmatpush1.msra.mxu0 0.0
      %1879 = vmatprep.subr.mxu0 0.0
      %1880 = vmatpush1.msra.mxu0 0.0
      %1881 = vmatprep.subr.mxu0 0.0
      %1882 = vmatpush1.msra.mxu0 0.0
      %1883 = vmatprep.subr.mxu0 0.0
      %1884 = vmatpush1.msra.mxu0 0.0
      %1885 = vmatprep.subr.mxu0 0.0
      %1886 = vmatpush1.msra.mxu0 %v1855
      %1887 = vmatprep.subr.mxu0 0.0
      %1888 = vmatpush1.msra.mxu0 %v1842
      %1889 = vmatprep.subr.mxu0 0.0
      %1890 = vmatpush2.msra.mxu0 0.0
      %1891 = vmatprep.subr.mxu0 0.0
      %1892 = vmatpush2.msra.mxu0 0.0
      %1893 = vmatprep.subr.mxu0 0.0
      %1894 = vmatpush2.msra.mxu0 0.0
      %1895 = vmatprep.subr.mxu0 0.0
      %1896 = vmatpush2.msra.mxu0 0.0
      %1897 = vmatprep.subr.mxu0 0.0
      %1898 = vmatpush2.msra.mxu0 0.0
      %1899 = vmatprep.subr.mxu0 0.0
      %1900 = vmatpush2.msra.mxu0 0.0
      %1901 = vmatprep.subr.mxu0 0.0
      %1902 = vmatpush2.msra.mxu0 0.0
      %1903 = vmatprep.subr.mxu0 0.0
      %1904 = vmatpush2.msra.mxu0 0.0
      %1905 = vmatprep.subr.mxu0 0.0
      %1906 = vmatpush2.msra.mxu0 0.0
      %1907 = vmatprep.subr.mxu0 0.0
      %1908 = vmatpush2.msra.mxu0 0.0
      %1909 = vmatprep.subr.mxu0 0.0
      %1910 = vmatpush2.msra.mxu0 0.0
      %1911 = vmatprep.subr.mxu0 0.0
      %1912 = vmatpush2.msra.mxu0 0.0
      %1913 = vmatprep.subr.mxu0 0.0
      %1914 = vmatpush2.msra.mxu0 0.0
      %1915 = vmatprep.subr.mxu0 0.0
      %1916 = vmatpush2.msra.mxu0 0.0
      %1917 = vmatprep.subr.mxu0 0.0
      %1918 = vmatpush2.msra.mxu0 0.0
      %1919 = vmatprep.subr.mxu0 0.0
      %1920 = vmatpush2.msra.mxu0 0.0
      %1921 = vmatprep.mubr.f32.mxu0 0.0
      %1922 = vmatmul.mubr.f32.gmra.mxu0 %v1849
      %v1923 = vpop.f32.mrf.mxu0
      %v1924 = vadd.f32 %v457, %v1923
      %v1925 = vpop.f32.mrf.mxu0
      %1926 = vmatprep.mubr.f32.mxu0 0.0
      %1927 = vmatmul.mubr.f32.gmra.mxu0 %v1852
      %v1928 = vpop.f32.mrf.mxu0
      %v1929 = vadd.f32 %v461, %v1928
      %v1930 = vpop.f32.mrf.mxu0
      %1931 = vdwg.mxu0
      %v1944 = vsel %vm1829, %v1748, %v1746
      %v1945 = vsel %vm1831, %v1750, %v1944
      %v1946 = vsel %vm1833, %v1752, %v1945
      %v1947 = vsel %vm1835, %v1754, %v1946
      %v1948 = vsel %vm1837, %v1756, %v1947
      %v1949 = vsel %vm1839, %v1758, %v1948
      %v1950 = vsel %vm1841, %v1760, %v1949
      %v1951 = vsel %vm1829, %v1764, %v1762
      %v1952 = vsel %vm1831, %v1766, %v1951
      %v1953 = vsel %vm1833, %v1768, %v1952
      %v1955 = vsel %vm1854, %v1953, 0
      %1957 = vmatprep.subr.mxu0 0.0
      %1958 = vmatpush1.msra.mxu0 0.0
      %1959 = vmatprep.subr.mxu0 0.0
      %1960 = vmatpush1.msra.mxu0 0.0
      %1961 = vmatprep.subr.mxu0 0.0
      %1962 = vmatpush1.msra.mxu0 0.0
      %1963 = vmatprep.subr.mxu0 0.0
      %1964 = vmatpush1.msra.mxu0 0.0
      %1965 = vmatprep.subr.mxu0 0.0
      %1966 = vmatpush1.msra.mxu0 0.0
      %1967 = vmatprep.subr.mxu0 0.0
      %1968 = vmatpush1.msra.mxu0 0.0
      %1969 = vmatprep.subr.mxu0 0.0
      %1970 = vmatpush1.msra.mxu0 0.0
      %1971 = vmatprep.subr.mxu0 0.0
      %1972 = vmatpush1.msra.mxu0 0.0
      %1973 = vmatprep.subr.mxu0 0.0
      %1974 = vmatpush1.msra.mxu0 0.0
      %1975 = vmatprep.subr.mxu0 0.0
      %1976 = vmatpush1.msra.mxu0 0.0
      %1977 = vmatprep.subr.mxu0 0.0
      %1978 = vmatpush1.msra.mxu0 0.0
      %1979 = vmatprep.subr.mxu0 0.0
      %1980 = vmatpush1.msra.mxu0 0.0
      %1981 = vmatprep.subr.mxu0 0.0
      %1982 = vmatpush1.msra.mxu0 0.0
      %1983 = vmatprep.subr.mxu0 0.0
      %1984 = vmatpush1.msra.mxu0 0.0
      %1985 = vmatprep.subr.mxu0 0.0
      %1986 = vmatpush1.msra.mxu0 %v1955
      %1987 = vmatprep.subr.mxu0 0.0
      %1988 = vmatpush1.msra.mxu0 %v1950
      %1989 = vmatprep.subr.mxu0 0.0
      %1990 = vmatpush2.msra.mxu0 0.0
      %1991 = vmatprep.subr.mxu0 0.0
      %1992 = vmatpush2.msra.mxu0 0.0
      %1993 = vmatprep.subr.mxu0 0.0
      %1994 = vmatpush2.msra.mxu0 0.0
      %1995 = vmatprep.subr.mxu0 0.0
      %1996 = vmatpush2.msra.mxu0 0.0
      %1997 = vmatprep.subr.mxu0 0.0
      %1998 = vmatpush2.msra.mxu0 0.0
      %1999 = vmatprep.subr.mxu0 0.0
      %2000 = vmatpush2.msra.mxu0 0.0
      %2001 = vmatprep.subr.mxu0 0.0
      %2002 = vmatpush2.msra.mxu0 0.0
      %2003 = vmatprep.subr.mxu0 0.0
      %2004 = vmatpush2.msra.mxu0 0.0
      %2005 = vmatprep.subr.mxu0 0.0
      %2006 = vmatpush2.msra.mxu0 0.0
      %2007 = vmatprep.subr.mxu0 0.0
      %2008 = vmatpush2.msra.mxu0 0.0
      %2009 = vmatprep.subr.mxu0 0.0
      %2010 = vmatpush2.msra.mxu0 0.0
      %2011 = vmatprep.subr.mxu0 0.0
      %2012 = vmatpush2.msra.mxu0 0.0
      %2013 = vmatprep.subr.mxu0 0.0
      %2014 = vmatpush2.msra.mxu0 0.0
      %2015 = vmatprep.subr.mxu0 0.0
      %2016 = vmatpush2.msra.mxu0 0.0
      %2017 = vmatprep.subr.mxu0 0.0
      %2018 = vmatpush2.msra.mxu0 0.0
      %2019 = vmatprep.subr.mxu0 0.0
      %2020 = vmatpush2.msra.mxu0 0.0
      %2021 = vmatprep.mubr.f32.mxu0 0.0
      %2022 = vmatmul.mubr.f32.gmra.mxu0 %v1849
      %v2023 = vpop.f32.mrf.mxu0
      %v2024 = vadd.f32 %v457, %v2023
      %v2025 = vpop.f32.mrf.mxu0
      %2026 = vmatprep.mubr.f32.mxu0 0.0
      %2027 = vmatmul.mubr.f32.gmra.mxu0 %v1852
      %v2028 = vpop.f32.mrf.mxu0
      %v2029 = vadd.f32 %v461, %v2028
      %v2030 = vpop.f32.mrf.mxu0
      %2031 = vdwg.mxu0
      %v2032 = vmax.f32 %v1924, %v2024
      %v2033 = vmax.f32 %v1929, %v2029
      %v2046 = vsel %vm1829, %v1772, %v1770
      %v2047 = vsel %vm1831, %v1774, %v2046
      %v2048 = vsel %vm1833, %v1776, %v2047
      %v2049 = vsel %vm1835, %v1778, %v2048
      %v2050 = vsel %vm1837, %v1780, %v2049
      %v2051 = vsel %vm1839, %v1782, %v2050
      %v2052 = vsel %vm1841, %v1784, %v2051
      %v2053 = vsel %vm1829, %v1788, %v1786
      %v2054 = vsel %vm1831, %v1790, %v2053
      %v2055 = vsel %vm1833, %v1792, %v2054
      %v2057 = vsel %vm1854, %v2055, 0
      %2059 = vmatprep.subr.mxu0 0.0
      %2060 = vmatpush1.msra.mxu0 0.0
      %2061 = vmatprep.subr.mxu0 0.0
      %2062 = vmatpush1.msra.mxu0 0.0
      %2063 = vmatprep.subr.mxu0 0.0
      %2064 = vmatpush1.msra.mxu0 0.0
      %2065 = vmatprep.subr.mxu0 0.0
      %2066 = vmatpush1.msra.mxu0 0.0
      %2067 = vmatprep.subr.mxu0 0.0
      %2068 = vmatpush1.msra.mxu0 0.0
      %2069 = vmatprep.subr.mxu0 0.0
      %2070 = vmatpush1.msra.mxu0 0.0
      %2071 = vmatprep.subr.mxu0 0.0
      %2072 = vmatpush1.msra.mxu0 0.0
      %2073 = vmatprep.subr.mxu0 0.0
      %2074 = vmatpush1.msra.mxu0 0.0
      %2075 = vmatprep.subr.mxu0 0.0
      %2076 = vmatpush1.msra.mxu0 0.0
      %2077 = vmatprep.subr.mxu0 0.0
      %2078 = vmatpush1.msra.mxu0 0.0
      %2079 = vmatprep.subr.mxu0 0.0
      %2080 = vmatpush1.msra.mxu0 0.0
      %2081 = vmatprep.subr.mxu0 0.0
      %2082 = vmatpush1.msra.mxu0 0.0
      %2083 = vmatprep.subr.mxu0 0.0
      %2084 = vmatpush1.msra.mxu0 0.0
      %2085 = vmatprep.subr.mxu0 0.0
      %2086 = vmatpush1.msra.mxu0 0.0
      %2087 = vmatprep.subr.mxu0 0.0
      %2088 = vmatpush1.msra.mxu0 %v2057
      %2089 = vmatprep.subr.mxu0 0.0
      %2090 = vmatpush1.msra.mxu0 %v2052
      %2091 = vmatprep.subr.mxu0 0.0
      %2092 = vmatpush2.msra.mxu0 0.0
      %2093 = vmatprep.subr.mxu0 0.0
      %2094 = vmatpush2.msra.mxu0 0.0
      %2095 = vmatprep.subr.mxu0 0.0
      %2096 = vmatpush2.msra.mxu0 0.0
      %2097 = vmatprep.subr.mxu0 0.0
      %2098 = vmatpush2.msra.mxu0 0.0
      %2099 = vmatprep.subr.mxu0 0.0
      %2100 = vmatpush2.msra.mxu0 0.0
      %2101 = vmatprep.subr.mxu0 0.0
      %2102 = vmatpush2.msra.mxu0 0.0
      %2103 = vmatprep.subr.mxu0 0.0
      %2104 = vmatpush2.msra.mxu0 0.0
      %2105 = vmatprep.subr.mxu0 0.0
      %2106 = vmatpush2.msra.mxu0 0.0
      %2107 = vmatprep.subr.mxu0 0.0
      %2108 = vmatpush2.msra.mxu0 0.0
      %2109 = vmatprep.subr.mxu0 0.0
      %2110 = vmatpush2.msra.mxu0 0.0
      %2111 = vmatprep.subr.mxu0 0.0
      %2112 = vmatpush2.msra.mxu0 0.0
      %2113 = vmatprep.subr.mxu0 0.0
      %2114 = vmatpush2.msra.mxu0 0.0
      %2115 = vmatprep.subr.mxu0 0.0
      %2116 = vmatpush2.msra.mxu0 0.0
      %2117 = vmatprep.subr.mxu0 0.0
      %2118 = vmatpush2.msra.mxu0 0.0
      %2119 = vmatprep.subr.mxu0 0.0
      %2120 = vmatpush2.msra.mxu0 0.0
      %2121 = vmatprep.subr.mxu0 0.0
      %2122 = vmatpush2.msra.mxu0 0.0
      %2123 = vmatprep.mubr.f32.mxu0 0.0
      %2124 = vmatmul.mubr.f32.gmra.mxu0 %v1849
      %v2125 = vpop.f32.mrf.mxu0
      %v2126 = vadd.f32 %v457, %v2125
      %v2127 = vpop.f32.mrf.mxu0
      %2128 = vmatprep.mubr.f32.mxu0 0.0
      %2129 = vmatmul.mubr.f32.gmra.mxu0 %v1852
      %v2130 = vpop.f32.mrf.mxu0
      %v2131 = vadd.f32 %v461, %v2130
      %v2132 = vpop.f32.mrf.mxu0
      %2133 = vdwg.mxu0
      %v2134 = vmax.f32 %v2032, %v2126
      %v2135 = vmax.f32 %v2033, %v2131
      %v2148 = vsel %vm1829, %v1796, %v1794
      %v2149 = vsel %vm1831, %v1798, %v2148
      %v2150 = vsel %vm1833, %v1800, %v2149
      %v2151 = vsel %vm1835, %v1802, %v2150
      %v2152 = vsel %vm1837, %v1804, %v2151
      %v2153 = vsel %vm1839, %v1806, %v2152
      %v2154 = vsel %vm1841, %v1808, %v2153
      %v2155 = vsel %vm1829, %v1812, %v1810
      %v2156 = vsel %vm1831, %v1814, %v2155
      %v2157 = vsel %vm1833, %v1816, %v2156
      %v2159 = vsel %vm1854, %v2157, 0
      %2161 = vmatprep.subr.mxu0 0.0
      %2162 = vmatpush1.msra.mxu0 0.0
      %2163 = vmatprep.subr.mxu0 0.0
      %2164 = vmatpush1.msra.mxu0 0.0
      %2165 = vmatprep.subr.mxu0 0.0
      %2166 = vmatpush1.msra.mxu0 0.0
      %2167 = vmatprep.subr.mxu0 0.0
      %2168 = vmatpush1.msra.mxu0 0.0
      %2169 = vmatprep.subr.mxu0 0.0
      %2170 = vmatpush1.msra.mxu0 0.0
      %2171 = vmatprep.subr.mxu0 0.0
      %2172 = vmatpush1.msra.mxu0 0.0
      %2173 = vmatprep.subr.mxu0 0.0
      %2174 = vmatpush1.msra.mxu0 0.0
      %2175 = vmatprep.subr.mxu0 0.0
      %2176 = vmatpush1.msra.mxu0 0.0
      %2177 = vmatprep.subr.mxu0 0.0
      %2178 = vmatpush1.msra.mxu0 0.0
      %2179 = vmatprep.subr.mxu0 0.0
      %2180 = vmatpush1.msra.mxu0 0.0
      %2181 = vmatprep.subr.mxu0 0.0
      %2182 = vmatpush1.msra.mxu0 0.0
      %2183 = vmatprep.subr.mxu0 0.0
      %2184 = vmatpush1.msra.mxu0 0.0
      %2185 = vmatprep.subr.mxu0 0.0
      %2186 = vmatpush1.msra.mxu0 0.0
      %2187 = vmatprep.subr.mxu0 0.0
      %2188 = vmatpush1.msra.mxu0 0.0
      %2189 = vmatprep.subr.mxu0 0.0
      %2190 = vmatpush1.msra.mxu0 %v2159
      %2191 = vmatprep.subr.mxu0 0.0
      %2192 = vmatpush1.msra.mxu0 %v2154
      %2193 = vmatprep.subr.mxu0 0.0
      %2194 = vmatpush2.msra.mxu0 0.0
      %2195 = vmatprep.subr.mxu0 0.0
      %2196 = vmatpush2.msra.mxu0 0.0
      %2197 = vmatprep.subr.mxu0 0.0
      %2198 = vmatpush2.msra.mxu0 0.0
      %2199 = vmatprep.subr.mxu0 0.0
      %2200 = vmatpush2.msra.mxu0 0.0
      %2201 = vmatprep.subr.mxu0 0.0
      %2202 = vmatpush2.msra.mxu0 0.0
      %2203 = vmatprep.subr.mxu0 0.0
      %2204 = vmatpush2.msra.mxu0 0.0
      %2205 = vmatprep.subr.mxu0 0.0
      %2206 = vmatpush2.msra.mxu0 0.0
      %2207 = vmatprep.subr.mxu0 0.0
      %2208 = vmatpush2.msra.mxu0 0.0
      %2209 = vmatprep.subr.mxu0 0.0
      %2210 = vmatpush2.msra.mxu0 0.0
      %2211 = vmatprep.subr.mxu0 0.0
      %2212 = vmatpush2.msra.mxu0 0.0
      %2213 = vmatprep.subr.mxu0 0.0
      %2214 = vmatpush2.msra.mxu0 0.0
      %2215 = vmatprep.subr.mxu0 0.0
      %2216 = vmatpush2.msra.mxu0 0.0
      %2217 = vmatprep.subr.mxu0 0.0
      %2218 = vmatpush2.msra.mxu0 0.0
      %2219 = vmatprep.subr.mxu0 0.0
      %2220 = vmatpush2.msra.mxu0 0.0
      %2221 = vmatprep.subr.mxu0 0.0
      %2222 = vmatpush2.msra.mxu0 0.0
      %2223 = vmatprep.subr.mxu0 0.0
      %2224 = vmatpush2.msra.mxu0 0.0
      %2225 = vmatprep.mubr.f32.mxu0 0.0
      %2226 = vmatmul.mubr.f32.gmra.mxu0 %v1849
      %v2227 = vpop.f32.mrf.mxu0
      %v2228 = vadd.f32 %v457, %v2227
      %v2229 = vpop.f32.mrf.mxu0
      %2230 = vmatprep.mubr.f32.mxu0 0.0
      %2231 = vmatmul.mubr.f32.gmra.mxu0 %v1852
      %v2232 = vpop.f32.mrf.mxu0
      %v2233 = vadd.f32 %v461, %v2232
      %v2234 = vpop.f32.mrf.mxu0
      %2235 = vdwg.mxu0
      %v2236 = vmax.f32 %v2134, %v2228
      %v2237 = vmax.f32 %v2135, %v2233
      %v2238 = vmax.f32 %v2236, 0.0
      %v2239 = vmax.f32 %v2237, 0.0
      %2240 = vst.msk [vmem:[%s323] sm:$0xff] %vm952, %v2238
      %vm2241 = vcmask 11264
      %2242 = vst.msk [vmem:[%s323 + $0x8] sm:$0xf] %vm2241, %v2239
      %p2243 = scmp.lt.s32.totalorder %s21, 3
      %s2244 = scalar_select %p2243, %s21, 3
      %p2245 = scmp.lt.s32.totalorder %s20, 0
      %s2246 = scalar_select %p2245, %s20, 0
      %s2247 = smul.addr %s2244, 2
      %s2248 = sadd.s32 %s2246, %s2247
      %s2249 = smul.addr %s2248, 8
      %s2250 = scalar_lea.vmem %s5, %s2249
      // Predicated region
      $region41: #{tpu_custom_call.1} parent=39 // pred_check
        %p2251 = pneg %p180
      $region42: #{tpu_custom_call.1} parent=39 // pred_check_branch
        %2253 = sbr.rel (%p2251) target = $region44
      $region43: #{tpu_custom_call.1} parent=39 // pred_region
        _
      $region44: #{tpu_custom_call.1} parent=39 // pred_fallthru
        _
    $region40: #{tpu_custom_call.1} parent=5 // pred_fallthru
      _
    %p2254 = scmp.le.s32.totalorder 2, %s11
    // Predicated region
    $region45: #{tpu_custom_call.1} parent=5 // pred_check
      %p2255 = pneg %p2254
    $region46: #{tpu_custom_call.1} parent=5 // pred_check_branch
      %2257 = sbr.rel (%p2255) target = $region48
    $region47: #{tpu_custom_call.1} parent=5 // pred_region
      %s2258 = ssub.s32 %s11, 2
      // Predicated region
      $region49: #{tpu_custom_call.1} parent=47 // pred_check
        %p2259 = pneg %p186
      $region50: #{tpu_custom_call.1} parent=47 // pred_check_branch
        %2261 = sbr.rel (%p2259) target = $region52
      $region51: #{tpu_custom_call.1} parent=47 // pred_region
        %p2262 = scmp.lt.s32.totalorder %s23, 3
        %s2263 = scalar_select %p2262, %s23, 3
        %p2264 = scmp.lt.s32.totalorder %s22, 0
        %s2265 = scalar_select %p2264, %s22, 0
        %s2266 = smul.addr %s2263, 2
        %s2267 = sadd.s32 %s2265, %s2266
        %s2268 = smul.addr %s2267, 8
        %s2269 = scalar_lea.vmem %s5, %s2268
      $region52: #{tpu_custom_call.1} parent=47 // pred_fallthru
        _
    $region48: #{tpu_custom_call.1} parent=5 // pred_fallthru
      _
  $region6: #{tpu_custom_call.1} parent=0 // loop_footer
    %s15 = sadd.s32 1, %s11
  $region7: #{tpu_custom_call.1} parent=0 // loop_footer_branch
    %10 = sbr.rel target = $region3
  $region8: #{tpu_custom_call.1} parent=0 // loop_exit
    _

</llo_original>
